<compile_context>
chip_gen: v7x
topology: tpu7x:2x2x1
jax: 0.10.0
libtpu: 0.0.40
codegen_flags: <defaults>
</compile_context>

<pallas_src>
import jax
import jax.numpy as jnp
from jax.experimental import pallas as pl
from jax.experimental.pallas import tpu as pltpu


# ------------------------------ helpers -------------------------------------

def _round_up(x, m):
    return ((x + m - 1) // m) * m


def _pick_tile(n, target, align):
    """Return (tile, padded_extent): tile <= target, padded_extent % tile == 0."""
    if n >= target:
        return target, _round_up(n, target)
    t = _round_up(n, align)
    return t, t


def _derive_time_chunk(T, Bp, E, Hp, budget_bytes=32 << 20, cap=64):
    """Pick the time-chunk length from a per-kernel VMEM budget."""
    G4 = 4 * Hp
    # resident / double-buffered fixed cost (bf16 weights, f32 bias + h/c scratch)
    fixed = (2 * Hp * G4 * 2      # W_hh^T (double-buffered, bf16)
             + 2 * E * G4 * 2     # W_ih^T
             + 2 * G4 * 4         # bias
             + 2 * Bp * Hp * 4)   # h/c scratch
    # per-timestep cost: x chunk + h_out chunk (double-buffered bf16) + gx scratch f32
    per_t = 2 * Bp * E * 2 + 2 * Bp * Hp * 2 + Bp * G4 * 4
    avail = max(budget_bytes - fixed, per_t)
    return int(max(1, min(cap, avail // per_t, T)))


# ------------------- kernel 1: fused input-proj + LSTM recurrence ------------

def _lstm_fused_kernel(x_ref, wih_ref, whh_ref, bias_ref, h_out_ref,
                       gx_sc, h_sc, c_sc):
    """Per time-chunk: gates_x = x @ W_ih^T + b (one big MXU matmul into VMEM
    scratch), then Tc serial recurrence steps against it.

    x_ref    : [Tc*Bp, E]   bf16   embedded tokens for this chunk (time-major rows)
    wih_ref  : [E, 4*Hp]    bf16   W_ih^T, per-gate lane-padded
    whh_ref  : [Hp, 4*Hp]   bf16   W_hh^T, per-gate lane-padded
    bias_ref : [1, 4*Hp]    f32    b_ih + b_hh
    h_out_ref: [Tc*Bp, Hp]  bf16   hidden states for this chunk
    gx_sc    : [Tc*Bp, 4*Hp] f32   VMEM scratch (input gate pre-activations)
    h_sc,c_sc: [Bp, Hp]      f32   VMEM scratch, persistent across grid iterations
    """
    Bp, Hp = h_sc.shape
    Tc = gx_sc.shape[0] // Bp

    @pl.when(pl.program_id(0) == 0)
    def _():
        h_sc[...] = jnp.zeros_like(h_sc)
        c_sc[...] = jnp.zeros_like(c_sc)

    # Hoisted chunk-wide input projection: bf16 operands, f32 accumulation.
    gx_sc[...] = (jnp.dot(x_ref[...], wih_ref[...],
                          preferred_element_type=jnp.float32)
                  + bias_ref[...])

    # Hoisted weight load (stays out of the unrolled recurrence body).
    whh = whh_ref[...]

    def sigmoid(x):
        # 0.5*tanh(0.5*x)+0.5: one EUP tanh + VPU fma (no logistic exp/div path).
        return 0.5 * jnp.tanh(0.5 * x) + 0.5

    def step(i, carry):
        row = pl.multiple_of(i * Bp, Bp)
        gates = (gx_sc[pl.ds(row, Bp), :]
                 + jnp.dot(h_sc[...].astype(jnp.bfloat16), whh,
                           preferred_element_type=jnp.float32))
        # Gate slices are full-vreg (Hp multiple of 128) -> lane-aligned.
        i_g = sigmoid(gates[:, 0 * Hp:1 * Hp])
        f_g = sigmoid(gates[:, 1 * Hp:2 * Hp])
        g_g = jnp.tanh(gates[:, 2 * Hp:3 * Hp])
        o_g = sigmoid(gates[:, 3 * Hp:4 * Hp])

        c_new = f_g * c_sc[...] + i_g * g_g
        h_new = o_g * jnp.tanh(c_new)

        c_sc[...] = c_new
        h_sc[...] = h_new
        h_out_ref[pl.ds(row, Bp), :] = h_new.astype(jnp.bfloat16)
        return carry

    # Partial unroll: LLO scheduler visibility without instruction-memory blowup.
    jax.lax.fori_loop(0, Tc, step, 0, unroll=min(8, Tc))


def lstm_recurrence_pallas(x2d, wih_T, whh_T, bias, *, Tc, Bp, Hp):
    """x2d: [T_pad*Bp, E] bf16 -> h_all [T_pad*Bp, Hp] bf16."""
    TB, E = x2d.shape
    G4 = 4 * Hp
    n_chunks = TB // (Tc * Bp)

    grid_spec = pltpu.PrefetchScalarGridSpec(
        num_scalar_prefetch=0,
        grid=(n_chunks,),
        in_specs=[
            pl.BlockSpec((Tc * Bp, E), lambda t: (t, 0)),
            pl.BlockSpec((E, G4), lambda t: (0, 0)),
            pl.BlockSpec((Hp, G4), lambda t: (0, 0)),
            pl.BlockSpec((1, G4), lambda t: (0, 0)),
        ],
        out_specs=pl.BlockSpec((Tc * Bp, Hp), lambda t: (t, 0)),
        scratch_shapes=[
            pltpu.VMEM((Tc * Bp, G4), jnp.float32),   # gates_x chunk
            pltpu.VMEM((Bp, Hp), jnp.float32),        # h state
            pltpu.VMEM((Bp, Hp), jnp.float32),        # c state
        ],
    )
    return pl.pallas_call(
        _lstm_fused_kernel,
        out_shape=jax.ShapeDtypeStruct((TB, Hp), jnp.bfloat16),
        grid_spec=grid_spec,
        compiler_params=pltpu.CompilerParams(
            dimension_semantics=("arbitrary",),       # time is a recurrence
            vmem_limit_bytes=48 << 20),
    )(x2d, wih_T, whh_T, bias)


# --------------------- kernel 2: tiled matmul + bias (output proj) -----------

def _matmul_bias_kernel(x_ref, w_ref, b_ref, o_ref):
    # x_ref: [TM, K] bf16, w_ref: [K, TN] bf16, b_ref: [1, TN] f32, o_ref: [TM, TN] f32
    o_ref[...] = (jnp.dot(x_ref[...], w_ref[...],
                          preferred_element_type=jnp.float32)
                  + b_ref[...])


def matmul_bias_pallas(x, w, b, *, tm, tn):
    """x: [M, K], w: [K, N], b: [1, N] -> [M, N] f32.  M % tm == 0, N % tn == 0."""
    M, K = x.shape
    N = w.shape[1]
    grid_spec = pltpu.PrefetchScalarGridSpec(
        num_scalar_prefetch=0,
        grid=(M // tm, N // tn),
        in_specs=[
            pl.BlockSpec((tm, K), lambda m, n: (m, 0)),
            pl.BlockSpec((K, tn), lambda m, n: (0, n)),
            pl.BlockSpec((1, tn), lambda m, n: (0, n)),
        ],
        out_specs=pl.BlockSpec((tm, tn), lambda m, n: (m, n)),
    )
    return pl.pallas_call(
        _matmul_bias_kernel,
        out_shape=jax.ShapeDtypeStruct((M, N), jnp.float32),
        grid_spec=grid_spec,
        compiler_params=pltpu.CompilerParams(
            dimension_semantics=("parallel", "parallel"),
            vmem_limit_bytes=48 << 20),
    )(x, w, b)


# ------------------------------- wrapper --------------------------------------

def lstm_language_model_forward(tokens, params):
    """Reproduces LSTMLanguageModel.forward (eval mode: dropout = identity)."""
    B, T = tokens.shape
    E = params["embedding"].shape[1]
    H = params["w_hh"].shape[1]
    V = params["w_out"].shape[0]

    Bp = _round_up(B, 16)       # bf16 sublane-packed batch
    Hp = _round_up(H, 128)      # per-gate lane-aligned hidden
    G4 = 4 * Hp

    Tc = _derive_time_chunk(T, Bp, E, Hp)
    T_pad = _round_up(T, Tc)

    # Embedding gather, directly time-major: [T, B, E]  (gather; JAX glue)
    emb_tm = params["embedding"][tokens.T]
    # TODO(synk): dropout layers are identity here (inference / eval mode).
    x = jnp.pad(emb_tm, ((0, T_pad - T), (0, Bp - B), (0, 0)))
    x2d = x.reshape(T_pad * Bp, E).astype(jnp.bfloat16)

    # Per-gate zero-padded weights (gate order i, f, g, o; padded gate
    # pre-activations are exactly 0 -> padded h/c columns stay 0 forever).
    wih_T = jnp.transpose(params["w_ih"]).reshape(E, 4, H)
    wih_T = jnp.pad(wih_T, ((0, 0), (0, 0), (0, Hp - H)))
    wih_T = wih_T.reshape(E, G4).astype(jnp.bfloat16)
    whh_T = jnp.transpose(params["w_hh"]).reshape(H, 4, H)
    whh_T = jnp.pad(whh_T, ((0, Hp - H), (0, 0), (0, Hp - H)))
    whh_T = whh_T.reshape(Hp, G4).astype(jnp.bfloat16)
    bias = (params["b_ih"] + params["b_hh"]).reshape(4, H)
    bias = jnp.pad(bias, ((0, 0), (0, Hp - H))).reshape(1, G4)     # f32

    # 1+2) fused input projection + recurrence: [T_pad*Bp, Hp] bf16
    h_all = lstm_recurrence_pallas(x2d, wih_T, whh_T, bias, Tc=Tc, Bp=Bp, Hp=Hp)

    # 3) output projection, tiled over rows and vocab (lane-dense stores).
    TN, Vp = _pick_tile(V, 512, 128)
    wout_T = jnp.pad(jnp.transpose(params["w_out"]),
                     ((0, Hp - H), (0, Vp - V))).astype(jnp.bfloat16)  # [Hp, Vp]
    bout = jnp.pad(params["b_out"], (0, Vp - V)).reshape(1, Vp)        # f32

    M = T_pad * Bp
    TM, M_pad = _pick_tile(M, 256, 16)
    if M_pad > M:
        h_all = jnp.pad(h_all, ((0, M_pad - M), (0, 0)))
    logits = matmul_bias_pallas(h_all, wout_T, bout, tm=TM, tn=TN)     # [M_pad, Vp]
    logits = logits[:M].reshape(T_pad, Bp, Vp)[:T, :B, :V]             # [T, B, V]

    # [T, B, V] -> [B, V, T]  ==  linear(output).permute(0, 2, 1)
    return jnp.transpose(logits, (1, 2, 0))


# --------------------------- pure-JAX reference -------------------------------

def reference_forward(tokens, params):
    emb = params["embedding"][tokens]                 # [B, T, E]
    B = emb.shape[0]
    H = params["w_hh"].shape[1]

    def step(carry, x_t):
        h, c = carry
        gates = (x_t @ params["w_ih"].T + h @ params["w_hh"].T
                 + params["b_ih"] + params["b_hh"])
        i_g, f_g, g_g, o_g = jnp.split(gates, 4, axis=-1)
        i_g, f_g, o_g = (jax.nn.sigmoid(i_g), jax.nn.sigmoid(f_g),
                         jax.nn.sigmoid(o_g))
        g_g = jnp.tanh(g_g)
        c = f_g * c + i_g * g_g
        h = o_g * jnp.tanh(c)
        return (h, c), h

    x_tm = jnp.transpose(emb, (1, 0, 2))              # [T, B, E]
    init = (jnp.zeros((B, H), jnp.float32), jnp.zeros((B, H), jnp.float32))
    _, hs = jax.lax.scan(step, init, x_tm)            # [T, B, H]
    logits = hs @ params["w_out"].T + params["b_out"]  # [T, B, V]
    return jnp.transpose(logits, (1, 2, 0))           # [B, V, T]


# ---------------------------------- main --------------------------------------

if __name__ == "__main__":
    VOCAB = 64
    EMB = 16
    HID = 32
    PAD = 0
    B, T = 2, 8

    key = jax.random.PRNGKey(0)
    keys = jax.random.split(key, 8)
    k_inv_h = 1.0 / jnp.sqrt(HID)

    emb_table = jax.random.normal(keys[0], (VOCAB, EMB), jnp.float32)
    emb_table = emb_table.at[PAD].set(0.0)            # padding_idx row is zero

    def u(k, shape, scale):
        return jax.random.uniform(k, shape, jnp.float32, -scale, scale)

    params = {
        "embedding": emb_table,
        "w_ih": u(keys[1], (4 * HID, EMB), k_inv_h),  # PyTorch gate order i,f,g,o
        "w_hh": u(keys[2], (4 * HID, HID), k_inv_h),
        "b_ih": u(keys[3], (4 * HID,), k_inv_h),
        "b_hh": u(keys[4], (4 * HID,), k_inv_h),
        "w_out": u(keys[5], (VOCAB, HID), k_inv_h),
        "b_out": u(keys[6], (VOCAB,), k_inv_h),
    }

    tokens = jax.random.randint(keys[7], (B, T), 0, VOCAB, dtype=jnp.int32)

    out = lstm_language_model_forward(tokens, params)
    out = jax.block_until_ready(out)

    ref = jax.block_until_ready(reference_forward(tokens, params))

    assert out.shape == (B, VOCAB, T), out.shape
    # bf16 MXU operands (f32 accumulation / gate math) -> relaxed tolerance vs the
    # f32 reference.
    assert jnp.allclose(out, ref, atol=5e-2, rtol=5e-2), \
        f"max err {jnp.max(jnp.abs(out - ref))}"

    print("KERNEL_OK")
</pallas_src>

<mosaic_0001>
module attributes {stable_mosaic.version = 11 : i64} {
  func.func @_lstm_fused_kernel(%arg0: i32, %arg1: memref<128x16xbf16, #tpu.memory_space<vmem>>, %arg2: memref<16x512xbf16, #tpu.memory_space<vmem>>, %arg3: memref<128x512xbf16, #tpu.memory_space<vmem>>, %arg4: memref<1x512xf32, #tpu.memory_space<vmem>>, %arg5: memref<128x128xbf16, #tpu.memory_space<vmem>>, %arg6: memref<128x512xf32, #tpu.memory_space<vmem>>, %arg7: memref<16x128xf32, #tpu.memory_space<vmem>>, %arg8: memref<16x128xf32, #tpu.memory_space<vmem>>) attributes {dimension_semantics = [#tpu.dimension_semantics<arbitrary>], iteration_bounds = array<i64: 1>, scalar_prefetch = 0 : i64, scratch_operands = 3 : i64, tpu.core_type = #tpu.core_type<tc>, window_params = [{transform_indices = @transform_0, window_bounds = array<i64: 128, 16>}, {pipeline_mode = #tpu.pipeline_mode<synchronous>, transform_indices = @transform_1, window_bounds = array<i64: 16, 512>}, {pipeline_mode = #tpu.pipeline_mode<synchronous>, transform_indices = @transform_2, window_bounds = array<i64: 128, 512>}, {pipeline_mode = #tpu.pipeline_mode<synchronous>, transform_indices = @transform_3, window_bounds = array<i64: 1, 512>}, {transform_indices = @transform_4, window_bounds = array<i64: 128, 128>}]} {
    %c0_i32 = arith.constant 0 : i32
    %0 = arith.cmpi eq, %arg0, %c0_i32 : i32
    %1 = arith.extui %0 : i1 to i32
    %c0_i32_0 = arith.constant 0 : i32
    %2 = arith.cmpi ne, %1, %c0_i32_0 : i32
    scf.if %2 {
      %cst_178 = arith.constant 0.000000e+00 : f32
      %371 = vector.broadcast %cst_178 : f32 to vector<16x128xf32>
      %c0_179 = arith.constant 0 : index
      %c0_180 = arith.constant 0 : index
      %372 = vector.load %arg7[%c0_179, %c0_180] : memref<16x128xf32, #tpu.memory_space<vmem>>, vector<16x128xf32>
      tpu.vector_store %arg7[%c0_179, %c0_180], %371 {strides = array<i32>} : memref<16x128xf32, #tpu.memory_space<vmem>>, vector<16x128xf32>,
      %cst_181 = arith.constant 0.000000e+00 : f32
      %373 = vector.broadcast %cst_181 : f32 to vector<16x128xf32>
      %c0_182 = arith.constant 0 : index
      %c0_183 = arith.constant 0 : index
      %374 = vector.load %arg8[%c0_182, %c0_183] : memref<16x128xf32, #tpu.memory_space<vmem>>, vector<16x128xf32>
      tpu.vector_store %arg8[%c0_182, %c0_183], %373 {strides = array<i32>} : memref<16x128xf32, #tpu.memory_space<vmem>>, vector<16x128xf32>,
    } else {
    }
    %c0 = arith.constant 0 : index
    %c0_1 = arith.constant 0 : index
    %3 = vector.load %arg1[%c0, %c0_1] : memref<128x16xbf16, #tpu.memory_space<vmem>>, vector<128x16xbf16>
    %c0_2 = arith.constant 0 : index
    %c0_3 = arith.constant 0 : index
    %4 = vector.load %arg2[%c0_2, %c0_3] : memref<16x512xbf16, #tpu.memory_space<vmem>>, vector<16x512xbf16>
    %cst = arith.constant dense<0.000000e+00> : vector<128x512xf32>
    %5 = tpu.matmul %3, %4, %cst {dimension_numbers = #tpu.dot_dimension_numbers<[1], [0], [0], [1], [0, 0, 1, 1], [], []>} : vector<128x16xbf16>, vector<16x512xbf16>, vector<128x512xf32> -> vector<128x512xf32>
    %c0_4 = arith.constant 0 : index
    %c0_5 = arith.constant 0 : index
    %6 = vector.load %arg4[%c0_4, %c0_5] : memref<1x512xf32, #tpu.memory_space<vmem>>, vector<1x512xf32>
    %7 = vector.broadcast %6 : vector<1x512xf32> to vector<128x512xf32>
    %8 = arith.addf %5, %7 : vector<128x512xf32>
    %c0_6 = arith.constant 0 : index
    %c0_7 = arith.constant 0 : index
    %9 = vector.load %arg6[%c0_6, %c0_7] : memref<128x512xf32, #tpu.memory_space<vmem>>, vector<128x512xf32>
    tpu.vector_store %arg6[%c0_6, %c0_7], %8 {strides = array<i32>} : memref<128x512xf32, #tpu.memory_space<vmem>>, vector<128x512xf32>,
    %c0_8 = arith.constant 0 : index
    %c0_9 = arith.constant 0 : index
    %10 = vector.load %arg3[%c0_8, %c0_9] : memref<128x512xbf16, #tpu.memory_space<vmem>>, vector<128x512xbf16>
    %c0_i32_10 = arith.constant 0 : i32
    %c16_i32 = arith.constant 16 : i32
    %11 = arith.muli %c0_i32_10, %c16_i32 : i32
    %12 = tpu.assume_multiple %11, 16 : i32
    %13 = arith.index_cast %12 : i32 to index
    %c0_11 = arith.constant 0 : index
    %14 = vector.load %arg6[%13, %c0_11] : memref<128x512xf32, #tpu.memory_space<vmem>>, vector<16x512xf32>
    %c0_12 = arith.constant 0 : index
    %c0_13 = arith.constant 0 : index
    %15 = vector.load %arg7[%c0_12, %c0_13] : memref<16x128xf32, #tpu.memory_space<vmem>>, vector<16x128xf32>
    %16 = arith.truncf %15 : vector<16x128xf32> to vector<16x128xbf16>
    %cst_14 = arith.constant dense<0.000000e+00> : vector<16x512xf32>
    %17 = tpu.matmul %16, %10, %cst_14 {dimension_numbers = #tpu.dot_dimension_numbers<[1], [0], [0], [1], [0, 0, 1, 1], [], []>} : vector<16x128xbf16>, vector<128x512xbf16>, vector<16x512xf32> -> vector<16x512xf32>
    %18 = arith.addf %14, %17 : vector<16x512xf32>
    %19 = vector.extract_strided_slice %18 {offsets = [0, 0], sizes = [16, 128], strides = [1, 1]} : vector<16x512xf32> to vector<16x128xf32>
    %cst_15 = arith.constant 5.000000e-01 : f32
    %20 = vector.broadcast %cst_15 : f32 to vector<16x128xf32>
    %21 = arith.mulf %20, %19 : vector<16x128xf32>
    %22 = math.tanh %21 : vector<16x128xf32>
    %cst_16 = arith.constant 5.000000e-01 : f32
    %23 = vector.broadcast %cst_16 : f32 to vector<16x128xf32>
    %24 = arith.mulf %23, %22 : vector<16x128xf32>
    %cst_17 = arith.constant 5.000000e-01 : f32
    %25 = vector.broadcast %cst_17 : f32 to vector<16x128xf32>
    %26 = arith.addf %24, %25 : vector<16x128xf32>
    %27 = vector.extract_strided_slice %18 {offsets = [0, 128], sizes = [16, 128], strides = [1, 1]} : vector<16x512xf32> to vector<16x128xf32>
    %cst_18 = arith.constant 5.000000e-01 : f32
    %28 = vector.broadcast %cst_18 : f32 to vector<16x128xf32>
    %29 = arith.mulf %28, %27 : vector<16x128xf32>
    %30 = math.tanh %29 : vector<16x128xf32>
    %cst_19 = arith.constant 5.000000e-01 : f32
    %31 = vector.broadcast %cst_19 : f32 to vector<16x128xf32>
    %32 = arith.mulf %31, %30 : vector<16x128xf32>
    %cst_20 = arith.constant 5.000000e-01 : f32
    %33 = vector.broadcast %cst_20 : f32 to vector<16x128xf32>
    %34 = arith.addf %32, %33 : vector<16x128xf32>
    %35 = vector.extract_strided_slice %18 {offsets = [0, 256], sizes = [16, 128], strides = [1, 1]} : vector<16x512xf32> to vector<16x128xf32>
    %36 = math.tanh %35 : vector<16x128xf32>
    %37 = vector.extract_strided_slice %18 {offsets = [0, 384], sizes = [16, 128], strides = [1, 1]} : vector<16x512xf32> to vector<16x128xf32>
    %cst_21 = arith.constant 5.000000e-01 : f32
    %38 = vector.broadcast %cst_21 : f32 to vector<16x128xf32>
    %39 = arith.mulf %38, %37 : vector<16x128xf32>
    %40 = math.tanh %39 : vector<16x128xf32>
    %cst_22 = arith.constant 5.000000e-01 : f32
    %41 = vector.broadcast %cst_22 : f32 to vector<16x128xf32>
    %42 = arith.mulf %41, %40 : vector<16x128xf32>
    %cst_23 = arith.constant 5.000000e-01 : f32
    %43 = vector.broadcast %cst_23 : f32 to vector<16x128xf32>
    %44 = arith.addf %42, %43 : vector<16x128xf32>
    %c0_24 = arith.constant 0 : index
    %c0_25 = arith.constant 0 : index
    %45 = vector.load %arg8[%c0_24, %c0_25] : memref<16x128xf32, #tpu.memory_space<vmem>>, vector<16x128xf32>
    %46 = arith.mulf %34, %45 : vector<16x128xf32>
    %47 = arith.mulf %26, %36 : vector<16x128xf32>
    %48 = arith.addf %46, %47 : vector<16x128xf32>
    %49 = math.tanh %48 : vector<16x128xf32>
    %50 = arith.mulf %44, %49 : vector<16x128xf32>
    %c0_26 = arith.constant 0 : index
    %c0_27 = arith.constant 0 : index
    %51 = vector.load %arg8[%c0_26, %c0_27] : memref<16x128xf32, #tpu.memory_space<vmem>>, vector<16x128xf32>
    tpu.vector_store %arg8[%c0_26, %c0_27], %48 {strides = array<i32>} : memref<16x128xf32, #tpu.memory_space<vmem>>, vector<16x128xf32>,
    %c0_28 = arith.constant 0 : index
    %c0_29 = arith.constant 0 : index
    %52 = vector.load %arg7[%c0_28, %c0_29] : memref<16x128xf32, #tpu.memory_space<vmem>>, vector<16x128xf32>
    tpu.vector_store %arg7[%c0_28, %c0_29], %50 {strides = array<i32>} : memref<16x128xf32, #tpu.memory_space<vmem>>, vector<16x128xf32>,
    %53 = arith.truncf %50 : vector<16x128xf32> to vector<16x128xbf16>
    %54 = arith.index_cast %12 : i32 to index
    %c0_30 = arith.constant 0 : index
    %55 = vector.load %arg5[%54, %c0_30] : memref<128x128xbf16, #tpu.memory_space<vmem>>, vector<16x128xbf16>
    tpu.vector_store %arg5[%54, %c0_30], %53 {strides = array<i32>} : memref<128x128xbf16, #tpu.memory_space<vmem>>, vector<16x128xbf16>,
    %c1_i32 = arith.constant 1 : i32
    %c16_i32_31 = arith.constant 16 : i32
    %56 = arith.muli %c1_i32, %c16_i32_31 : i32
    %57 = tpu.assume_multiple %56, 16 : i32
    %58 = arith.index_cast %57 : i32 to index
    %c0_32 = arith.constant 0 : index
    %59 = vector.load %arg6[%58, %c0_32] : memref<128x512xf32, #tpu.memory_space<vmem>>, vector<16x512xf32>
    %c0_33 = arith.constant 0 : index
    %c0_34 = arith.constant 0 : index
    %60 = vector.load %arg7[%c0_33, %c0_34] : memref<16x128xf32, #tpu.memory_space<vmem>>, vector<16x128xf32>
    %61 = arith.truncf %60 : vector<16x128xf32> to vector<16x128xbf16>
    %cst_35 = arith.constant dense<0.000000e+00> : vector<16x512xf32>
    %62 = tpu.matmul %61, %10, %cst_35 {dimension_numbers = #tpu.dot_dimension_numbers<[1], [0], [0], [1], [0, 0, 1, 1], [], []>} : vector<16x128xbf16>, vector<128x512xbf16>, vector<16x512xf32> -> vector<16x512xf32>
    %63 = arith.addf %59, %62 : vector<16x512xf32>
    %64 = vector.extract_strided_slice %63 {offsets = [0, 0], sizes = [16, 128], strides = [1, 1]} : vector<16x512xf32> to vector<16x128xf32>
    %cst_36 = arith.constant 5.000000e-01 : f32
    %65 = vector.broadcast %cst_36 : f32 to vector<16x128xf32>
    %66 = arith.mulf %65, %64 : vector<16x128xf32>
    %67 = math.tanh %66 : vector<16x128xf32>
    %cst_37 = arith.constant 5.000000e-01 : f32
    %68 = vector.broadcast %cst_37 : f32 to vector<16x128xf32>
    %69 = arith.mulf %68, %67 : vector<16x128xf32>
    %cst_38 = arith.constant 5.000000e-01 : f32
    %70 = vector.broadcast %cst_38 : f32 to vector<16x128xf32>
    %71 = arith.addf %69, %70 : vector<16x128xf32>
    %72 = vector.extract_strided_slice %63 {offsets = [0, 128], sizes = [16, 128], strides = [1, 1]} : vector<16x512xf32> to vector<16x128xf32>
    %cst_39 = arith.constant 5.000000e-01 : f32
    %73 = vector.broadcast %cst_39 : f32 to vector<16x128xf32>
    %74 = arith.mulf %73, %72 : vector<16x128xf32>
    %75 = math.tanh %74 : vector<16x128xf32>
    %cst_40 = arith.constant 5.000000e-01 : f32
    %76 = vector.broadcast %cst_40 : f32 to vector<16x128xf32>
    %77 = arith.mulf %76, %75 : vector<16x128xf32>
    %cst_41 = arith.constant 5.000000e-01 : f32
    %78 = vector.broadcast %cst_41 : f32 to vector<16x128xf32>
    %79 = arith.addf %77, %78 : vector<16x128xf32>
    %80 = vector.extract_strided_slice %63 {offsets = [0, 256], sizes = [16, 128], strides = [1, 1]} : vector<16x512xf32> to vector<16x128xf32>
    %81 = math.tanh %80 : vector<16x128xf32>
    %82 = vector.extract_strided_slice %63 {offsets = [0, 384], sizes = [16, 128], strides = [1, 1]} : vector<16x512xf32> to vector<16x128xf32>
    %cst_42 = arith.constant 5.000000e-01 : f32
    %83 = vector.broadcast %cst_42 : f32 to vector<16x128xf32>
    %84 = arith.mulf %83, %82 : vector<16x128xf32>
    %85 = math.tanh %84 : vector<16x128xf32>
    %cst_43 = arith.constant 5.000000e-01 : f32
    %86 = vector.broadcast %cst_43 : f32 to vector<16x128xf32>
    %87 = arith.mulf %86, %85 : vector<16x128xf32>
    %cst_44 = arith.constant 5.000000e-01 : f32
    %88 = vector.broadcast %cst_44 : f32 to vector<16x128xf32>
    %89 = arith.addf %87, %88 : vector<16x128xf32>
    %c0_45 = arith.constant 0 : index
    %c0_46 = arith.constant 0 : index
    %90 = vector.load %arg8[%c0_45, %c0_46] : memref<16x128xf32, #tpu.memory_space<vmem>>, vector<16x128xf32>
    %91 = arith.mulf %79, %90 : vector<16x128xf32>
    %92 = arith.mulf %71, %81 : vector<16x128xf32>
    %93 = arith.addf %91, %92 : vector<16x128xf32>
    %94 = math.tanh %93 : vector<16x128xf32>
    %95 = arith.mulf %89, %94 : vector<16x128xf32>
    %c0_47 = arith.constant 0 : index
    %c0_48 = arith.constant 0 : index
    %96 = vector.load %arg8[%c0_47, %c0_48] : memref<16x128xf32, #tpu.memory_space<vmem>>, vector<16x128xf32>
    tpu.vector_store %arg8[%c0_47, %c0_48], %93 {strides = array<i32>} : memref<16x128xf32, #tpu.memory_space<vmem>>, vector<16x128xf32>,
    %c0_49 = arith.constant 0 : index
    %c0_50 = arith.constant 0 : index
    %97 = vector.load %arg7[%c0_49, %c0_50] : memref<16x128xf32, #tpu.memory_space<vmem>>, vector<16x128xf32>
    tpu.vector_store %arg7[%c0_49, %c0_50], %95 {strides = array<i32>} : memref<16x128xf32, #tpu.memory_space<vmem>>, vector<16x128xf32>,
    %98 = arith.truncf %95 : vector<16x128xf32> to vector<16x128xbf16>
    %99 = arith.index_cast %57 : i32 to index
    %c0_51 = arith.constant 0 : index
    %100 = vector.load %arg5[%99, %c0_51] : memref<128x128xbf16, #tpu.memory_space<vmem>>, vector<16x128xbf16>
    tpu.vector_store %arg5[%99, %c0_51], %98 {strides = array<i32>} : memref<128x128xbf16, #tpu.memory_space<vmem>>, vector<16x128xbf16>,
    %c2_i32 = arith.constant 2 : i32
    %c16_i32_52 = arith.constant 16 : i32
    %101 = arith.muli %c2_i32, %c16_i32_52 : i32
    %102 = tpu.assume_multiple %101, 16 : i32
    %103 = arith.index_cast %102 : i32 to index
    %c0_53 = arith.constant 0 : index
    %104 = vector.load %arg6[%103, %c0_53] : memref<128x512xf32, #tpu.memory_space<vmem>>, vector<16x512xf32>
    %c0_54 = arith.constant 0 : index
    %c0_55 = arith.constant 0 : index
    %105 = vector.load %arg7[%c0_54, %c0_55] : memref<16x128xf32, #tpu.memory_space<vmem>>, vector<16x128xf32>
    %106 = arith.truncf %105 : vector<16x128xf32> to vector<16x128xbf16>
    %cst_56 = arith.constant dense<0.000000e+00> : vector<16x512xf32>
    %107 = tpu.matmul %106, %10, %cst_56 {dimension_numbers = #tpu.dot_dimension_numbers<[1], [0], [0], [1], [0, 0, 1, 1], [], []>} : vector<16x128xbf16>, vector<128x512xbf16>, vector<16x512xf32> -> vector<16x512xf32>
    %108 = arith.addf %104, %107 : vector<16x512xf32>
    %109 = vector.extract_strided_slice %108 {offsets = [0, 0], sizes = [16, 128], strides = [1, 1]} : vector<16x512xf32> to vector<16x128xf32>
    %cst_57 = arith.constant 5.000000e-01 : f32
    %110 = vector.broadcast %cst_57 : f32 to vector<16x128xf32>
    %111 = arith.mulf %110, %109 : vector<16x128xf32>
    %112 = math.tanh %111 : vector<16x128xf32>
    %cst_58 = arith.constant 5.000000e-01 : f32
    %113 = vector.broadcast %cst_58 : f32 to vector<16x128xf32>
    %114 = arith.mulf %113, %112 : vector<16x128xf32>
    %cst_59 = arith.constant 5.000000e-01 : f32
    %115 = vector.broadcast %cst_59 : f32 to vector<16x128xf32>
    %116 = arith.addf %114, %115 : vector<16x128xf32>
    %117 = vector.extract_strided_slice %108 {offsets = [0, 128], sizes = [16, 128], strides = [1, 1]} : vector<16x512xf32> to vector<16x128xf32>
    %cst_60 = arith.constant 5.000000e-01 : f32
    %118 = vector.broadcast %cst_60 : f32 to vector<16x128xf32>
    %119 = arith.mulf %118, %117 : vector<16x128xf32>
    %120 = math.tanh %119 : vector<16x128xf32>
    %cst_61 = arith.constant 5.000000e-01 : f32
    %121 = vector.broadcast %cst_61 : f32 to vector<16x128xf32>
    %122 = arith.mulf %121, %120 : vector<16x128xf32>
    %cst_62 = arith.constant 5.000000e-01 : f32
    %123 = vector.broadcast %cst_62 : f32 to vector<16x128xf32>
    %124 = arith.addf %122, %123 : vector<16x128xf32>
    %125 = vector.extract_strided_slice %108 {offsets = [0, 256], sizes = [16, 128], strides = [1, 1]} : vector<16x512xf32> to vector<16x128xf32>
    %126 = math.tanh %125 : vector<16x128xf32>
    %127 = vector.extract_strided_slice %108 {offsets = [0, 384], sizes = [16, 128], strides = [1, 1]} : vector<16x512xf32> to vector<16x128xf32>
    %cst_63 = arith.constant 5.000000e-01 : f32
    %128 = vector.broadcast %cst_63 : f32 to vector<16x128xf32>
    %129 = arith.mulf %128, %127 : vector<16x128xf32>
    %130 = math.tanh %129 : vector<16x128xf32>
    %cst_64 = arith.constant 5.000000e-01 : f32
    %131 = vector.broadcast %cst_64 : f32 to vector<16x128xf32>
    %132 = arith.mulf %131, %130 : vector<16x128xf32>
    %cst_65 = arith.constant 5.000000e-01 : f32
    %133 = vector.broadcast %cst_65 : f32 to vector<16x128xf32>
    %134 = arith.addf %132, %133 : vector<16x128xf32>
    %c0_66 = arith.constant 0 : index
    %c0_67 = arith.constant 0 : index
    %135 = vector.load %arg8[%c0_66, %c0_67] : memref<16x128xf32, #tpu.memory_space<vmem>>, vector<16x128xf32>
    %136 = arith.mulf %124, %135 : vector<16x128xf32>
    %137 = arith.mulf %116, %126 : vector<16x128xf32>
    %138 = arith.addf %136, %137 : vector<16x128xf32>
    %139 = math.tanh %138 : vector<16x128xf32>
    %140 = arith.mulf %134, %139 : vector<16x128xf32>
    %c0_68 = arith.constant 0 : index
    %c0_69 = arith.constant 0 : index
    %141 = vector.load %arg8[%c0_68, %c0_69] : memref<16x128xf32, #tpu.memory_space<vmem>>, vector<16x128xf32>
    tpu.vector_store %arg8[%c0_68, %c0_69], %138 {strides = array<i32>} : memref<16x128xf32, #tpu.memory_space<vmem>>, vector<16x128xf32>,
    %c0_70 = arith.constant 0 : index
    %c0_71 = arith.constant 0 : index
    %142 = vector.load %arg7[%c0_70, %c0_71] : memref<16x128xf32, #tpu.memory_space<vmem>>, vector<16x128xf32>
    tpu.vector_store %arg7[%c0_70, %c0_71], %140 {strides = array<i32>} : memref<16x128xf32, #tpu.memory_space<vmem>>, vector<16x128xf32>,
    %143 = arith.truncf %140 : vector<16x128xf32> to vector<16x128xbf16>
    %144 = arith.index_cast %102 : i32 to index
    %c0_72 = arith.constant 0 : index
    %145 = vector.load %arg5[%144, %c0_72] : memref<128x128xbf16, #tpu.memory_space<vmem>>, vector<16x128xbf16>
    tpu.vector_store %arg5[%144, %c0_72], %143 {strides = array<i32>} : memref<128x128xbf16, #tpu.memory_space<vmem>>, vector<16x128xbf16>,
    %c3_i32 = arith.constant 3 : i32
    %c16_i32_73 = arith.constant 16 : i32
    %146 = arith.muli %c3_i32, %c16_i32_73 : i32
    %147 = tpu.assume_multiple %146, 16 : i32
    %148 = arith.index_cast %147 : i32 to index
    %c0_74 = arith.constant 0 : index
    %149 = vector.load %arg6[%148, %c0_74] : memref<128x512xf32, #tpu.memory_space<vmem>>, vector<16x512xf32>
    %c0_75 = arith.constant 0 : index
    %c0_76 = arith.constant 0 : index
    %150 = vector.load %arg7[%c0_75, %c0_76] : memref<16x128xf32, #tpu.memory_space<vmem>>, vector<16x128xf32>
    %151 = arith.truncf %150 : vector<16x128xf32> to vector<16x128xbf16>
    %cst_77 = arith.constant dense<0.000000e+00> : vector<16x512xf32>
    %152 = tpu.matmul %151, %10, %cst_77 {dimension_numbers = #tpu.dot_dimension_numbers<[1], [0], [0], [1], [0, 0, 1, 1], [], []>} : vector<16x128xbf16>, vector<128x512xbf16>, vector<16x512xf32> -> vector<16x512xf32>
    %153 = arith.addf %149, %152 : vector<16x512xf32>
    %154 = vector.extract_strided_slice %153 {offsets = [0, 0], sizes = [16, 128], strides = [1, 1]} : vector<16x512xf32> to vector<16x128xf32>
    %cst_78 = arith.constant 5.000000e-01 : f32
    %155 = vector.broadcast %cst_78 : f32 to vector<16x128xf32>
    %156 = arith.mulf %155, %154 : vector<16x128xf32>
    %157 = math.tanh %156 : vector<16x128xf32>
    %cst_79 = arith.constant 5.000000e-01 : f32
    %158 = vector.broadcast %cst_79 : f32 to vector<16x128xf32>
    %159 = arith.mulf %158, %157 : vector<16x128xf32>
    %cst_80 = arith.constant 5.000000e-01 : f32
    %160 = vector.broadcast %cst_80 : f32 to vector<16x128xf32>
    %161 = arith.addf %159, %160 : vector<16x128xf32>
    %162 = vector.extract_strided_slice %153 {offsets = [0, 128], sizes = [16, 128], strides = [1, 1]} : vector<16x512xf32> to vector<16x128xf32>
    %cst_81 = arith.constant 5.000000e-01 : f32
    %163 = vector.broadcast %cst_81 : f32 to vector<16x128xf32>
    %164 = arith.mulf %163, %162 : vector<16x128xf32>
    %165 = math.tanh %164 : vector<16x128xf32>
    %cst_82 = arith.constant 5.000000e-01 : f32
    %166 = vector.broadcast %cst_82 : f32 to vector<16x128xf32>
    %167 = arith.mulf %166, %165 : vector<16x128xf32>
    %cst_83 = arith.constant 5.000000e-01 : f32
    %168 = vector.broadcast %cst_83 : f32 to vector<16x128xf32>
    %169 = arith.addf %167, %168 : vector<16x128xf32>
    %170 = vector.extract_strided_slice %153 {offsets = [0, 256], sizes = [16, 128], strides = [1, 1]} : vector<16x512xf32> to vector<16x128xf32>
    %171 = math.tanh %170 : vector<16x128xf32>
    %172 = vector.extract_strided_slice %153 {offsets = [0, 384], sizes = [16, 128], strides = [1, 1]} : vector<16x512xf32> to vector<16x128xf32>
    %cst_84 = arith.constant 5.000000e-01 : f32
    %173 = vector.broadcast %cst_84 : f32 to vector<16x128xf32>
    %174 = arith.mulf %173, %172 : vector<16x128xf32>
    %175 = math.tanh %174 : vector<16x128xf32>
    %cst_85 = arith.constant 5.000000e-01 : f32
    %176 = vector.broadcast %cst_85 : f32 to vector<16x128xf32>
    %177 = arith.mulf %176, %175 : vector<16x128xf32>
    %cst_86 = arith.constant 5.000000e-01 : f32
    %178 = vector.broadcast %cst_86 : f32 to vector<16x128xf32>
    %179 = arith.addf %177, %178 : vector<16x128xf32>
    %c0_87 = arith.constant 0 : index
    %c0_88 = arith.constant 0 : index
    %180 = vector.load %arg8[%c0_87, %c0_88] : memref<16x128xf32, #tpu.memory_space<vmem>>, vector<16x128xf32>
    %181 = arith.mulf %169, %180 : vector<16x128xf32>
    %182 = arith.mulf %161, %171 : vector<16x128xf32>
    %183 = arith.addf %181, %182 : vector<16x128xf32>
    %184 = math.tanh %183 : vector<16x128xf32>
    %185 = arith.mulf %179, %184 : vector<16x128xf32>
    %c0_89 = arith.constant 0 : index
    %c0_90 = arith.constant 0 : index
    %186 = vector.load %arg8[%c0_89, %c0_90] : memref<16x128xf32, #tpu.memory_space<vmem>>, vector<16x128xf32>
    tpu.vector_store %arg8[%c0_89, %c0_90], %183 {strides = array<i32>} : memref<16x128xf32, #tpu.memory_space<vmem>>, vector<16x128xf32>,
    %c0_91 = arith.constant 0 : index
    %c0_92 = arith.constant 0 : index
    %187 = vector.load %arg7[%c0_91, %c0_92] : memref<16x128xf32, #tpu.memory_space<vmem>>, vector<16x128xf32>
    tpu.vector_store %arg7[%c0_91, %c0_92], %185 {strides = array<i32>} : memref<16x128xf32, #tpu.memory_space<vmem>>, vector<16x128xf32>,
    %188 = arith.truncf %185 : vector<16x128xf32> to vector<16x128xbf16>
    %189 = arith.index_cast %147 : i32 to index
    %c0_93 = arith.constant 0 : index
    %190 = vector.load %arg5[%189, %c0_93] : memref<128x128xbf16, #tpu.memory_space<vmem>>, vector<16x128xbf16>
    tpu.vector_store %arg5[%189, %c0_93], %188 {strides = array<i32>} : memref<128x128xbf16, #tpu.memory_space<vmem>>, vector<16x128xbf16>,
    %c4_i32 = arith.constant 4 : i32
    %c16_i32_94 = arith.constant 16 : i32
    %191 = arith.muli %c4_i32, %c16_i32_94 : i32
    %192 = tpu.assume_multiple %191, 16 : i32
    %193 = arith.index_cast %192 : i32 to index
    %c0_95 = arith.constant 0 : index
    %194 = vector.load %arg6[%193, %c0_95] : memref<128x512xf32, #tpu.memory_space<vmem>>, vector<16x512xf32>
    %c0_96 = arith.constant 0 : index
    %c0_97 = arith.constant 0 : index
    %195 = vector.load %arg7[%c0_96, %c0_97] : memref<16x128xf32, #tpu.memory_space<vmem>>, vector<16x128xf32>
    %196 = arith.truncf %195 : vector<16x128xf32> to vector<16x128xbf16>
    %cst_98 = arith.constant dense<0.000000e+00> : vector<16x512xf32>
    %197 = tpu.matmul %196, %10, %cst_98 {dimension_numbers = #tpu.dot_dimension_numbers<[1], [0], [0], [1], [0, 0, 1, 1], [], []>} : vector<16x128xbf16>, vector<128x512xbf16>, vector<16x512xf32> -> vector<16x512xf32>
    %198 = arith.addf %194, %197 : vector<16x512xf32>
    %199 = vector.extract_strided_slice %198 {offsets = [0, 0], sizes = [16, 128], strides = [1, 1]} : vector<16x512xf32> to vector<16x128xf32>
    %cst_99 = arith.constant 5.000000e-01 : f32
    %200 = vector.broadcast %cst_99 : f32 to vector<16x128xf32>
    %201 = arith.mulf %200, %199 : vector<16x128xf32>
    %202 = math.tanh %201 : vector<16x128xf32>
    %cst_100 = arith.constant 5.000000e-01 : f32
    %203 = vector.broadcast %cst_100 : f32 to vector<16x128xf32>
    %204 = arith.mulf %203, %202 : vector<16x128xf32>
    %cst_101 = arith.constant 5.000000e-01 : f32
    %205 = vector.broadcast %cst_101 : f32 to vector<16x128xf32>
    %206 = arith.addf %204, %205 : vector<16x128xf32>
    %207 = vector.extract_strided_slice %198 {offsets = [0, 128], sizes = [16, 128], strides = [1, 1]} : vector<16x512xf32> to vector<16x128xf32>
    %cst_102 = arith.constant 5.000000e-01 : f32
    %208 = vector.broadcast %cst_102 : f32 to vector<16x128xf32>
    %209 = arith.mulf %208, %207 : vector<16x128xf32>
    %210 = math.tanh %209 : vector<16x128xf32>
    %cst_103 = arith.constant 5.000000e-01 : f32
    %211 = vector.broadcast %cst_103 : f32 to vector<16x128xf32>
    %212 = arith.mulf %211, %210 : vector<16x128xf32>
    %cst_104 = arith.constant 5.000000e-01 : f32
    %213 = vector.broadcast %cst_104 : f32 to vector<16x128xf32>
    %214 = arith.addf %212, %213 : vector<16x128xf32>
    %215 = vector.extract_strided_slice %198 {offsets = [0, 256], sizes = [16, 128], strides = [1, 1]} : vector<16x512xf32> to vector<16x128xf32>
    %216 = math.tanh %215 : vector<16x128xf32>
    %217 = vector.extract_strided_slice %198 {offsets = [0, 384], sizes = [16, 128], strides = [1, 1]} : vector<16x512xf32> to vector<16x128xf32>
    %cst_105 = arith.constant 5.000000e-01 : f32
    %218 = vector.broadcast %cst_105 : f32 to vector<16x128xf32>
    %219 = arith.mulf %218, %217 : vector<16x128xf32>
    %220 = math.tanh %219 : vector<16x128xf32>
    %cst_106 = arith.constant 5.000000e-01 : f32
    %221 = vector.broadcast %cst_106 : f32 to vector<16x128xf32>
    %222 = arith.mulf %221, %220 : vector<16x128xf32>
    %cst_107 = arith.constant 5.000000e-01 : f32
    %223 = vector.broadcast %cst_107 : f32 to vector<16x128xf32>
    %224 = arith.addf %222, %223 : vector<16x128xf32>
    %c0_108 = arith.constant 0 : index
    %c0_109 = arith.constant 0 : index
    %225 = vector.load %arg8[%c0_108, %c0_109] : memref<16x128xf32, #tpu.memory_space<vmem>>, vector<16x128xf32>
    %226 = arith.mulf %214, %225 : vector<16x128xf32>
    %227 = arith.mulf %206, %216 : vector<16x128xf32>
    %228 = arith.addf %226, %227 : vector<16x128xf32>
    %229 = math.tanh %228 : vector<16x128xf32>
    %230 = arith.mulf %224, %229 : vector<16x128xf32>
    %c0_110 = arith.constant 0 : index
    %c0_111 = arith.constant 0 : index
    %231 = vector.load %arg8[%c0_110, %c0_111] : memref<16x128xf32, #tpu.memory_space<vmem>>, vector<16x128xf32>
    tpu.vector_store %arg8[%c0_110, %c0_111], %228 {strides = array<i32>} : memref<16x128xf32, #tpu.memory_space<vmem>>, vector<16x128xf32>,
    %c0_112 = arith.constant 0 : index
    %c0_113 = arith.constant 0 : index
    %232 = vector.load %arg7[%c0_112, %c0_113] : memref<16x128xf32, #tpu.memory_space<vmem>>, vector<16x128xf32>
    tpu.vector_store %arg7[%c0_112, %c0_113], %230 {strides = array<i32>} : memref<16x128xf32, #tpu.memory_space<vmem>>, vector<16x128xf32>,
    %233 = arith.truncf %230 : vector<16x128xf32> to vector<16x128xbf16>
    %234 = arith.index_cast %192 : i32 to index
    %c0_114 = arith.constant 0 : index
    %235 = vector.load %arg5[%234, %c0_114] : memref<128x128xbf16, #tpu.memory_space<vmem>>, vector<16x128xbf16>
    tpu.vector_store %arg5[%234, %c0_114], %233 {strides = array<i32>} : memref<128x128xbf16, #tpu.memory_space<vmem>>, vector<16x128xbf16>,
    %c5_i32 = arith.constant 5 : i32
    %c16_i32_115 = arith.constant 16 : i32
    %236 = arith.muli %c5_i32, %c16_i32_115 : i32
    %237 = tpu.assume_multiple %236, 16 : i32
    %238 = arith.index_cast %237 : i32 to index
    %c0_116 = arith.constant 0 : index
    %239 = vector.load %arg6[%238, %c0_116] : memref<128x512xf32, #tpu.memory_space<vmem>>, vector<16x512xf32>
    %c0_117 = arith.constant 0 : index
    %c0_118 = arith.constant 0 : index
    %240 = vector.load %arg7[%c0_117, %c0_118] : memref<16x128xf32, #tpu.memory_space<vmem>>, vector<16x128xf32>
    %241 = arith.truncf %240 : vector<16x128xf32> to vector<16x128xbf16>
    %cst_119 = arith.constant dense<0.000000e+00> : vector<16x512xf32>
    %242 = tpu.matmul %241, %10, %cst_119 {dimension_numbers = #tpu.dot_dimension_numbers<[1], [0], [0], [1], [0, 0, 1, 1], [], []>} : vector<16x128xbf16>, vector<128x512xbf16>, vector<16x512xf32> -> vector<16x512xf32>
    %243 = arith.addf %239, %242 : vector<16x512xf32>
    %244 = vector.extract_strided_slice %243 {offsets = [0, 0], sizes = [16, 128], strides = [1, 1]} : vector<16x512xf32> to vector<16x128xf32>
    %cst_120 = arith.constant 5.000000e-01 : f32
    %245 = vector.broadcast %cst_120 : f32 to vector<16x128xf32>
    %246 = arith.mulf %245, %244 : vector<16x128xf32>
    %247 = math.tanh %246 : vector<16x128xf32>
    %cst_121 = arith.constant 5.000000e-01 : f32
    %248 = vector.broadcast %cst_121 : f32 to vector<16x128xf32>
    %249 = arith.mulf %248, %247 : vector<16x128xf32>
    %cst_122 = arith.constant 5.000000e-01 : f32
    %250 = vector.broadcast %cst_122 : f32 to vector<16x128xf32>
    %251 = arith.addf %249, %250 : vector<16x128xf32>
    %252 = vector.extract_strided_slice %243 {offsets = [0, 128], sizes = [16, 128], strides = [1, 1]} : vector<16x512xf32> to vector<16x128xf32>
    %cst_123 = arith.constant 5.000000e-01 : f32
    %253 = vector.broadcast %cst_123 : f32 to vector<16x128xf32>
    %254 = arith.mulf %253, %252 : vector<16x128xf32>
    %255 = math.tanh %254 : vector<16x128xf32>
    %cst_124 = arith.constant 5.000000e-01 : f32
    %256 = vector.broadcast %cst_124 : f32 to vector<16x128xf32>
    %257 = arith.mulf %256, %255 : vector<16x128xf32>
    %cst_125 = arith.constant 5.000000e-01 : f32
    %258 = vector.broadcast %cst_125 : f32 to vector<16x128xf32>
    %259 = arith.addf %257, %258 : vector<16x128xf32>
    %260 = vector.extract_strided_slice %243 {offsets = [0, 256], sizes = [16, 128], strides = [1, 1]} : vector<16x512xf32> to vector<16x128xf32>
    %261 = math.tanh %260 : vector<16x128xf32>
    %262 = vector.extract_strided_slice %243 {offsets = [0, 384], sizes = [16, 128], strides = [1, 1]} : vector<16x512xf32> to vector<16x128xf32>
    %cst_126 = arith.constant 5.000000e-01 : f32
    %263 = vector.broadcast %cst_126 : f32 to vector<16x128xf32>
    %264 = arith.mulf %263, %262 : vector<16x128xf32>
    %265 = math.tanh %264 : vector<16x128xf32>
    %cst_127 = arith.constant 5.000000e-01 : f32
    %266 = vector.broadcast %cst_127 : f32 to vector<16x128xf32>
    %267 = arith.mulf %266, %265 : vector<16x128xf32>
    %cst_128 = arith.constant 5.000000e-01 : f32
    %268 = vector.broadcast %cst_128 : f32 to vector<16x128xf32>
    %269 = arith.addf %267, %268 : vector<16x128xf32>
    %c0_129 = arith.constant 0 : index
    %c0_130 = arith.constant 0 : index
    %270 = vector.load %arg8[%c0_129, %c0_130] : memref<16x128xf32, #tpu.memory_space<vmem>>, vector<16x128xf32>
    %271 = arith.mulf %259, %270 : vector<16x128xf32>
    %272 = arith.mulf %251, %261 : vector<16x128xf32>
    %273 = arith.addf %271, %272 : vector<16x128xf32>
    %274 = math.tanh %273 : vector<16x128xf32>
    %275 = arith.mulf %269, %274 : vector<16x128xf32>
    %c0_131 = arith.constant 0 : index
    %c0_132 = arith.constant 0 : index
    %276 = vector.load %arg8[%c0_131, %c0_132] : memref<16x128xf32, #tpu.memory_space<vmem>>, vector<16x128xf32>
    tpu.vector_store %arg8[%c0_131, %c0_132], %273 {strides = array<i32>} : memref<16x128xf32, #tpu.memory_space<vmem>>, vector<16x128xf32>,
    %c0_133 = arith.constant 0 : index
    %c0_134 = arith.constant 0 : index
    %277 = vector.load %arg7[%c0_133, %c0_134] : memref<16x128xf32, #tpu.memory_space<vmem>>, vector<16x128xf32>
    tpu.vector_store %arg7[%c0_133, %c0_134], %275 {strides = array<i32>} : memref<16x128xf32, #tpu.memory_space<vmem>>, vector<16x128xf32>,
    %278 = arith.truncf %275 : vector<16x128xf32> to vector<16x128xbf16>
    %279 = arith.index_cast %237 : i32 to index
    %c0_135 = arith.constant 0 : index
    %280 = vector.load %arg5[%279, %c0_135] : memref<128x128xbf16, #tpu.memory_space<vmem>>, vector<16x128xbf16>
    tpu.vector_store %arg5[%279, %c0_135], %278 {strides = array<i32>} : memref<128x128xbf16, #tpu.memory_space<vmem>>, vector<16x128xbf16>,
    %c6_i32 = arith.constant 6 : i32
    %c16_i32_136 = arith.constant 16 : i32
    %281 = arith.muli %c6_i32, %c16_i32_136 : i32
    %282 = tpu.assume_multiple %281, 16 : i32
    %283 = arith.index_cast %282 : i32 to index
    %c0_137 = arith.constant 0 : index
    %284 = vector.load %arg6[%283, %c0_137] : memref<128x512xf32, #tpu.memory_space<vmem>>, vector<16x512xf32>
    %c0_138 = arith.constant 0 : index
    %c0_139 = arith.constant 0 : index
    %285 = vector.load %arg7[%c0_138, %c0_139] : memref<16x128xf32, #tpu.memory_space<vmem>>, vector<16x128xf32>
    %286 = arith.truncf %285 : vector<16x128xf32> to vector<16x128xbf16>
    %cst_140 = arith.constant dense<0.000000e+00> : vector<16x512xf32>
    %287 = tpu.matmul %286, %10, %cst_140 {dimension_numbers = #tpu.dot_dimension_numbers<[1], [0], [0], [1], [0, 0, 1, 1], [], []>} : vector<16x128xbf16>, vector<128x512xbf16>, vector<16x512xf32> -> vector<16x512xf32>
    %288 = arith.addf %284, %287 : vector<16x512xf32>
    %289 = vector.extract_strided_slice %288 {offsets = [0, 0], sizes = [16, 128], strides = [1, 1]} : vector<16x512xf32> to vector<16x128xf32>
    %cst_141 = arith.constant 5.000000e-01 : f32
    %290 = vector.broadcast %cst_141 : f32 to vector<16x128xf32>
    %291 = arith.mulf %290, %289 : vector<16x128xf32>
    %292 = math.tanh %291 : vector<16x128xf32>
    %cst_142 = arith.constant 5.000000e-01 : f32
    %293 = vector.broadcast %cst_142 : f32 to vector<16x128xf32>
    %294 = arith.mulf %293, %292 : vector<16x128xf32>
    %cst_143 = arith.constant 5.000000e-01 : f32
    %295 = vector.broadcast %cst_143 : f32 to vector<16x128xf32>
    %296 = arith.addf %294, %295 : vector<16x128xf32>
    %297 = vector.extract_strided_slice %288 {offsets = [0, 128], sizes = [16, 128], strides = [1, 1]} : vector<16x512xf32> to vector<16x128xf32>
    %cst_144 = arith.constant 5.000000e-01 : f32
    %298 = vector.broadcast %cst_144 : f32 to vector<16x128xf32>
    %299 = arith.mulf %298, %297 : vector<16x128xf32>
    %300 = math.tanh %299 : vector<16x128xf32>
    %cst_145 = arith.constant 5.000000e-01 : f32
    %301 = vector.broadcast %cst_145 : f32 to vector<16x128xf32>
    %302 = arith.mulf %301, %300 : vector<16x128xf32>
    %cst_146 = arith.constant 5.000000e-01 : f32
    %303 = vector.broadcast %cst_146 : f32 to vector<16x128xf32>
    %304 = arith.addf %302, %303 : vector<16x128xf32>
    %305 = vector.extract_strided_slice %288 {offsets = [0, 256], sizes = [16, 128], strides = [1, 1]} : vector<16x512xf32> to vector<16x128xf32>
    %306 = math.tanh %305 : vector<16x128xf32>
    %307 = vector.extract_strided_slice %288 {offsets = [0, 384], sizes = [16, 128], strides = [1, 1]} : vector<16x512xf32> to vector<16x128xf32>
    %cst_147 = arith.constant 5.000000e-01 : f32
    %308 = vector.broadcast %cst_147 : f32 to vector<16x128xf32>
    %309 = arith.mulf %308, %307 : vector<16x128xf32>
    %310 = math.tanh %309 : vector<16x128xf32>
    %cst_148 = arith.constant 5.000000e-01 : f32
    %311 = vector.broadcast %cst_148 : f32 to vector<16x128xf32>
    %312 = arith.mulf %311, %310 : vector<16x128xf32>
    %cst_149 = arith.constant 5.000000e-01 : f32
    %313 = vector.broadcast %cst_149 : f32 to vector<16x128xf32>
    %314 = arith.addf %312, %313 : vector<16x128xf32>
    %c0_150 = arith.constant 0 : index
    %c0_151 = arith.constant 0 : index
    %315 = vector.load %arg8[%c0_150, %c0_151] : memref<16x128xf32, #tpu.memory_space<vmem>>, vector<16x128xf32>
    %316 = arith.mulf %304, %315 : vector<16x128xf32>
    %317 = arith.mulf %296, %306 : vector<16x128xf32>
    %318 = arith.addf %316, %317 : vector<16x128xf32>
    %319 = math.tanh %318 : vector<16x128xf32>
    %320 = arith.mulf %314, %319 : vector<16x128xf32>
    %c0_152 = arith.constant 0 : index
    %c0_153 = arith.constant 0 : index
    %321 = vector.load %arg8[%c0_152, %c0_153] : memref<16x128xf32, #tpu.memory_space<vmem>>, vector<16x128xf32>
    tpu.vector_store %arg8[%c0_152, %c0_153], %318 {strides = array<i32>} : memref<16x128xf32, #tpu.memory_space<vmem>>, vector<16x128xf32>,
    %c0_154 = arith.constant 0 : index
    %c0_155 = arith.constant 0 : index
    %322 = vector.load %arg7[%c0_154, %c0_155] : memref<16x128xf32, #tpu.memory_space<vmem>>, vector<16x128xf32>
    tpu.vector_store %arg7[%c0_154, %c0_155], %320 {strides = array<i32>} : memref<16x128xf32, #tpu.memory_space<vmem>>, vector<16x128xf32>,
    %323 = arith.truncf %320 : vector<16x128xf32> to vector<16x128xbf16>
    %324 = arith.index_cast %282 : i32 to index
    %c0_156 = arith.constant 0 : index
    %325 = vector.load %arg5[%324, %c0_156] : memref<128x128xbf16, #tpu.memory_space<vmem>>, vector<16x128xbf16>
    tpu.vector_store %arg5[%324, %c0_156], %323 {strides = array<i32>} : memref<128x128xbf16, #tpu.memory_space<vmem>>, vector<16x128xbf16>,
    %c7_i32 = arith.constant 7 : i32
    %c16_i32_157 = arith.constant 16 : i32
    %326 = arith.muli %c7_i32, %c16_i32_157 : i32
    %327 = tpu.assume_multiple %326, 16 : i32
    %328 = arith.index_cast %327 : i32 to index
    %c0_158 = arith.constant 0 : index
    %329 = vector.load %arg6[%328, %c0_158] : memref<128x512xf32, #tpu.memory_space<vmem>>, vector<16x512xf32>
    %c0_159 = arith.constant 0 : index
    %c0_160 = arith.constant 0 : index
    %330 = vector.load %arg7[%c0_159, %c0_160] : memref<16x128xf32, #tpu.memory_space<vmem>>, vector<16x128xf32>
    %331 = arith.truncf %330 : vector<16x128xf32> to vector<16x128xbf16>
    %cst_161 = arith.constant dense<0.000000e+00> : vector<16x512xf32>
    %332 = tpu.matmul %331, %10, %cst_161 {dimension_numbers = #tpu.dot_dimension_numbers<[1], [0], [0], [1], [0, 0, 1, 1], [], []>} : vector<16x128xbf16>, vector<128x512xbf16>, vector<16x512xf32> -> vector<16x512xf32>
    %333 = arith.addf %329, %332 : vector<16x512xf32>
    %334 = vector.extract_strided_slice %333 {offsets = [0, 0], sizes = [16, 128], strides = [1, 1]} : vector<16x512xf32> to vector<16x128xf32>
    %cst_162 = arith.constant 5.000000e-01 : f32
    %335 = vector.broadcast %cst_162 : f32 to vector<16x128xf32>
    %336 = arith.mulf %335, %334 : vector<16x128xf32>
    %337 = math.tanh %336 : vector<16x128xf32>
    %cst_163 = arith.constant 5.000000e-01 : f32
    %338 = vector.broadcast %cst_163 : f32 to vector<16x128xf32>
    %339 = arith.mulf %338, %337 : vector<16x128xf32>
    %cst_164 = arith.constant 5.000000e-01 : f32
    %340 = vector.broadcast %cst_164 : f32 to vector<16x128xf32>
    %341 = arith.addf %339, %340 : vector<16x128xf32>
    %342 = vector.extract_strided_slice %333 {offsets = [0, 128], sizes = [16, 128], strides = [1, 1]} : vector<16x512xf32> to vector<16x128xf32>
    %cst_165 = arith.constant 5.000000e-01 : f32
    %343 = vector.broadcast %cst_165 : f32 to vector<16x128xf32>
    %344 = arith.mulf %343, %342 : vector<16x128xf32>
    %345 = math.tanh %344 : vector<16x128xf32>
    %cst_166 = arith.constant 5.000000e-01 : f32
    %346 = vector.broadcast %cst_166 : f32 to vector<16x128xf32>
    %347 = arith.mulf %346, %345 : vector<16x128xf32>
    %cst_167 = arith.constant 5.000000e-01 : f32
    %348 = vector.broadcast %cst_167 : f32 to vector<16x128xf32>
    %349 = arith.addf %347, %348 : vector<16x128xf32>
    %350 = vector.extract_strided_slice %333 {offsets = [0, 256], sizes = [16, 128], strides = [1, 1]} : vector<16x512xf32> to vector<16x128xf32>
    %351 = math.tanh %350 : vector<16x128xf32>
    %352 = vector.extract_strided_slice %333 {offsets = [0, 384], sizes = [16, 128], strides = [1, 1]} : vector<16x512xf32> to vector<16x128xf32>
    %cst_168 = arith.constant 5.000000e-01 : f32
    %353 = vector.broadcast %cst_168 : f32 to vector<16x128xf32>
    %354 = arith.mulf %353, %352 : vector<16x128xf32>
    %355 = math.tanh %354 : vector<16x128xf32>
    %cst_169 = arith.constant 5.000000e-01 : f32
    %356 = vector.broadcast %cst_169 : f32 to vector<16x128xf32>
    %357 = arith.mulf %356, %355 : vector<16x128xf32>
    %cst_170 = arith.constant 5.000000e-01 : f32
    %358 = vector.broadcast %cst_170 : f32 to vector<16x128xf32>
    %359 = arith.addf %357, %358 : vector<16x128xf32>
    %c0_171 = arith.constant 0 : index
    %c0_172 = arith.constant 0 : index
    %360 = vector.load %arg8[%c0_171, %c0_172] : memref<16x128xf32, #tpu.memory_space<vmem>>, vector<16x128xf32>
    %361 = arith.mulf %349, %360 : vector<16x128xf32>
    %362 = arith.mulf %341, %351 : vector<16x128xf32>
    %363 = arith.addf %361, %362 : vector<16x128xf32>
    %364 = math.tanh %363 : vector<16x128xf32>
    %365 = arith.mulf %359, %364 : vector<16x128xf32>
    %c0_173 = arith.constant 0 : index
    %c0_174 = arith.constant 0 : index
    %366 = vector.load %arg8[%c0_173, %c0_174] : memref<16x128xf32, #tpu.memory_space<vmem>>, vector<16x128xf32>
    tpu.vector_store %arg8[%c0_173, %c0_174], %363 {strides = array<i32>} : memref<16x128xf32, #tpu.memory_space<vmem>>, vector<16x128xf32>,
    %c0_175 = arith.constant 0 : index
    %c0_176 = arith.constant 0 : index
    %367 = vector.load %arg7[%c0_175, %c0_176] : memref<16x128xf32, #tpu.memory_space<vmem>>, vector<16x128xf32>
    tpu.vector_store %arg7[%c0_175, %c0_176], %365 {strides = array<i32>} : memref<16x128xf32, #tpu.memory_space<vmem>>, vector<16x128xf32>,
    %368 = arith.truncf %365 : vector<16x128xf32> to vector<16x128xbf16>
    %369 = arith.index_cast %327 : i32 to index
    %c0_177 = arith.constant 0 : index
    %370 = vector.load %arg5[%369, %c0_177] : memref<128x128xbf16, #tpu.memory_space<vmem>>, vector<16x128xbf16>
    tpu.vector_store %arg5[%369, %c0_177], %368 {strides = array<i32>} : memref<128x128xbf16, #tpu.memory_space<vmem>>, vector<16x128xbf16>,
    %c8_i32 = arith.constant 8 : i32
    return
  }
  func.func @transform_0(%arg0: i32) -> (i32, i32) {
    %c0_i32 = arith.constant 0 : i32
    %c0_i32_0 = arith.constant 0 : i32
    return %arg0, %c0_i32 : i32, i32
  }
  func.func @transform_1(%arg0: i32) -> (i32, i32) {
    %c0_i32 = arith.constant 0 : i32
    %c0_i32_0 = arith.constant 0 : i32
    %c0_i32_1 = arith.constant 0 : i32
    return %c0_i32, %c0_i32_0 : i32, i32
  }
  func.func @transform_2(%arg0: i32) -> (i32, i32) {
    %c0_i32 = arith.constant 0 : i32
    %c0_i32_0 = arith.constant 0 : i32
    %c0_i32_1 = arith.constant 0 : i32
    return %c0_i32, %c0_i32_0 : i32, i32
  }
  func.func @transform_3(%arg0: i32) -> (i32, i32) {
    %c0_i32 = arith.constant 0 : i32
    %c0_i32_0 = arith.constant 0 : i32
    %c0_i32_1 = arith.constant 0 : i32
    return %c0_i32, %c0_i32_0 : i32, i32
  }
  func.func @transform_4(%arg0: i32) -> (i32, i32) {
    %c0_i32 = arith.constant 0 : i32
    %c0_i32_0 = arith.constant 0 : i32
    return %arg0, %c0_i32 : i32, i32
  }
}

</mosaic_0001>

<llo_original>
// kernel: tpu_custom_call.1
$region0: #{tpu_custom_call.1}
  #allocation0 [shape = 'u32[]', space=smem, size = 0x4, offset = 0x4, fixed_abs, tag = 'smem constant byte address 0x4 - core index']
  #allocation1 [shape = 'u32[144,128]{1,0:T(1,128)}', space=vmem, size = 0x12000, scoped, tag = 'internal scratch']
  #allocation2 [shape = 'f32[128,512]{1,0:T(8,128)}', space=vmem, size = 0x40000, scoped, tag = 'scratch operand']
  #allocation3 [shape = 'f32[16,128]{1,0:T(8,128)}', space=vmem, size = 0x2000, scoped, tag = 'scratch operand']
  #allocation4 [shape = 'f32[16,128]{1,0:T(8,128)}', space=vmem, size = 0x2000, scoped, tag = 'scratch operand']
  %s0 = inlined_call_operand.vmem [shape: bf16[128,16], index: 0, kind: input, shape index: {}]
  %s1 = inlined_call_operand.vmem [shape: bf16[16,512], index: 1, kind: input, shape index: {}]
  %s2 = inlined_call_operand.hbm [shape: bf16[128,512], index: 2, kind: input, shape index: {}]
  %s3 = inlined_call_operand.vmem [shape: f32[1,512], index: 3, kind: input, shape index: {}]
  %s4 = inlined_call_operand.hbm [shape: bf16[128,128], index: 4, kind: output, shape index: {}]
  %s5 = sld [smem:[#allocation0]]
  $region34: #{tpu_custom_call.1} parent=0
    _
  %s7 = ssub.s32 1, %s5
  %s8 = scalar_select 0, %s7, %s5
  $region1: #{tpu_custom_call.1} parent=0
    #allocation5 [shape = 'u8[131072]{0}', space=vmem, size = 0x20000, scoped, tag = 'input window, operand 2, single buffered']
    #allocation6 [shape = 's32[1]{0}', space=sflag, size = 0x4, scoped, tag = 'scoped memory for tpu_custom_call.1']
    #allocation7 [shape = 's32[1]{0}', space=sflag, size = 0x4, scoped, tag = 'scoped memory for tpu_custom_call.1']
    #allocation8 [shape = 'u8[32768]{0}', space=vmem, size = 0x8000, scoped, tag = 'output window, operand 0, single buffered']
    %9 = vsyncpa [#allocation6], 0
    %10 = vsyncpa [#allocation7], 0
    // Predicated region
    $region2: #{tpu_custom_call.1} parent=1 // pred_check
      _
    $region3: #{tpu_custom_call.1} parent=1 // pred_check_branch
      %12 = sbr.rel (0) target = $region5
    $region4: #{tpu_custom_call.1} parent=1 // pred_region
      _
    $region5: #{tpu_custom_call.1} parent=1 // pred_fallthru
      _
    // Predicated region
    $region6: #{tpu_custom_call.1} parent=1 // pred_check
      _
    $region7: #{tpu_custom_call.1} parent=1 // pred_check_branch
      %14 = sbr.rel (0) target = $region9
    $region8: #{tpu_custom_call.1} parent=1 // pred_region
      _
    $region9: #{tpu_custom_call.1} parent=1 // pred_fallthru
      _
    // Predicated region
    $region10: #{tpu_custom_call.1} parent=1 // pred_check
      _
    $region11: #{tpu_custom_call.1} parent=1 // pred_check_branch
      %16 = sbr.rel (0) target = $region13
    $region12: #{tpu_custom_call.1} parent=1 // pred_region
      %s18 = ssub.s32 4096, 4096
      %19 = vsyncadd [#allocation6], %s18
      %s20 = sshll.u32 [#allocation5], 4
      %s21 = int_to_ptr.vmem [resolvable:$true] %s20
      %26 = dma.hbm_to_vmem [thread:$0]  %s2, 4096, %s21, [#allocation6], 256, 256, 16
    $region13: #{tpu_custom_call.1} parent=1 // pred_fallthru
      _
    // Predicated region
    $region14: #{tpu_custom_call.1} parent=1 // pred_check
      _
    $region15: #{tpu_custom_call.1} parent=1 // pred_check_branch
      %28 = sbr.rel (0) target = $region17
    $region16: #{tpu_custom_call.1} parent=1 // pred_region
      _
    $region17: #{tpu_custom_call.1} parent=1 // pred_fallthru
      _
    // Predicated region
    $region18: #{tpu_custom_call.1} parent=1 // pred_check
      _
    $region19: #{tpu_custom_call.1} parent=1 // pred_check_branch
      %30 = sbr.rel (0) target = $region21
    $region20: #{tpu_custom_call.1} parent=1 // pred_region
      %31 = dma.done [#allocation6], 4096
    $region21: #{tpu_custom_call.1} parent=1 // pred_fallthru
      _
    %p33 = scmp.eq.s32.totalorder 0, 0
    // Predicated region
    $region22: #{tpu_custom_call.1} parent=1 // pred_check
      %p34 = pneg %p33
    $region23: #{tpu_custom_call.1} parent=1 // pred_check_branch
      %36 = sbr.rel (%p34) target = $region25
    $region24: #{tpu_custom_call.1} parent=1 // pred_region
      %37 = vst [vmem:[#allocation3] sm:$0xff] 0.0
      %38 = vst [vmem:[#allocation3 + $0x8] sm:$0xff] 0.0
      %39 = vst [vmem:[#allocation4] sm:$0xff] 0.0
      %40 = vst [vmem:[#allocation4 + $0x8] sm:$0xff] 0.0
    $region25: #{tpu_custom_call.1} parent=1 // pred_fallthru
      _
    %v41 = vld [vmem:[%s0] sm:$0xf]
    %v42 = vld [vmem:[%s0 + $0x4] sm:$0xf]
    %v43 = vld [vmem:[%s0 + $0x8] sm:$0xf]
    %v44 = vld [vmem:[%s0 + $0xc] sm:$0xf]
    %v45 = vld [vmem:[%s0 + $0x10] sm:$0xf]
    %v46 = vld [vmem:[%s0 + $0x14] sm:$0xf]
    %v47 = vld [vmem:[%s0 + $0x18] sm:$0xf]
    %v48 = vld [vmem:[%s0 + $0x1c] sm:$0xf]
    %v49 = vld [vmem:[%s0 + $0x20] sm:$0xf]
    %v50 = vld [vmem:[%s0 + $0x24] sm:$0xf]
    %v51 = vld [vmem:[%s0 + $0x28] sm:$0xf]
    %v52 = vld [vmem:[%s0 + $0x2c] sm:$0xf]
    %v53 = vld [vmem:[%s0 + $0x30] sm:$0xf]
    %v54 = vld [vmem:[%s0 + $0x34] sm:$0xf]
    %v55 = vld [vmem:[%s0 + $0x38] sm:$0xf]
    %v56 = vld [vmem:[%s0 + $0x3c] sm:$0xf]
    %v57 = vld [vmem:[%s1] sm:$0xff]
    %v58 = vld [vmem:[%s1 + $0x8] sm:$0xff]
    %v59 = vld [vmem:[%s1 + $0x10] sm:$0xff]
    %v60 = vld [vmem:[%s1 + $0x18] sm:$0xff]
    %v61 = vld [vmem:[%s3] sm:$0xf]
    %v63 = vlaneseq
    %v64 = vshrl.u32 %v63, 7
    %v65 = vsub.s32 0, %v64
    %v66 = vrot.slane %v61, %v65
    %v67 = vlaneseq
    %v68 = vshrl.u32 %v67, 7
    %v69 = vsub.s32 1, %v68
    %v70 = vrot.slane %v61, %v69
    %v71 = vlaneseq
    %v72 = vshrl.u32 %v71, 7
    %v73 = vsub.s32 2, %v72
    %v74 = vrot.slane %v61, %v73
    %v75 = vlaneseq
    %v76 = vshrl.u32 %v75, 7
    %v77 = vsub.s32 3, %v76
    %v78 = vrot.slane %v61, %v77
    %v99 = vunpack.c.l.b16 %v41
    %v100 = vunpack.c.l.b16 %v42
    %v101 = vunpack.c.l.b16 %v43
    %v102 = vunpack.c.l.b16 %v44
    %v103 = vunpack.c.l.b16 %v45
    %v104 = vunpack.c.l.b16 %v46
    %v105 = vunpack.c.l.b16 %v47
    %v106 = vunpack.c.l.b16 %v48
    %v107 = vunpack.c.l.b16 %v49
    %v108 = vunpack.c.l.b16 %v50
    %v109 = vunpack.c.l.b16 %v51
    %v110 = vunpack.c.l.b16 %v52
    %v111 = vunpack.c.l.b16 %v53
    %v112 = vunpack.c.l.b16 %v54
    %v113 = vunpack.c.l.b16 %v55
    %v114 = vunpack.c.l.b16 %v56
    %v115 = vpack.c.b16 %v100, %v99
    %v116 = vpack.c.b16 %v102, %v101
    %v117 = vpack.c.b16 %v104, %v103
    %v118 = vpack.c.b16 %v106, %v105
    %v119 = vpack.c.b16 %v108, %v107
    %v120 = vpack.c.b16 %v110, %v109
    %v121 = vpack.c.b16 %v112, %v111
    %v122 = vpack.c.b16 %v114, %v113
    %v127 = vunpack.c.l.b16 %v57
    %v128 = vunpack.c.h.b16 %v57
    %v129 = vunpack.c.l.b16 %v58
    %v130 = vunpack.c.h.b16 %v58
    %v131 = vunpack.c.l.b16 %v59
    %v132 = vunpack.c.h.b16 %v59
    %v133 = vunpack.c.l.b16 %v60
    %v134 = vunpack.c.h.b16 %v60
    %v135 = vpack.c.b16 %v131, %v127
    %v136 = vpack.c.b16 %v132, %v128
    %v137 = vpack.c.b16 %v133, %v129
    %v138 = vpack.c.b16 %v134, %v130
    %vm143 = vcmask 130048
    %v145 = vsel %vm143, %v115, 0
    %v148 = vsel %vm143, %v116, 0
    %v151 = vsel %vm143, %v117, 0
    %v154 = vsel %vm143, %v118, 0
    %v157 = vsel %vm143, %v119, 0
    %v160 = vsel %vm143, %v120, 0
    %v163 = vsel %vm143, %v121, 0
    %v166 = vsel %vm143, %v122, 0
    %168 = vmatprep.subr.bf16.mxu0 %v136
    %169 = vmatpush1.bf16.msra.mxu0 %v135
    %170 = vmatprep.subr.bf16.mxu0 0
    %171 = vmatpush1.bf16.msra.mxu0 0
    %172 = vmatprep.subr.bf16.mxu0 0
    %173 = vmatpush1.bf16.msra.mxu0 0
    %174 = vmatprep.subr.bf16.mxu0 0
    %175 = vmatpush1.bf16.msra.mxu0 0
    %176 = vmatprep.subr.bf16.mxu0 0
    %177 = vmatpush1.bf16.msra.mxu0 0
    %178 = vmatprep.subr.bf16.mxu0 0
    %179 = vmatpush1.bf16.msra.mxu0 0
    %180 = vmatprep.subr.bf16.mxu0 0
    %181 = vmatpush1.bf16.msra.mxu0 0
    %182 = vmatprep.subr.bf16.mxu0 0
    %183 = vmatpush1.bf16.msra.mxu0 0
    %184 = vmatprep.subr.bf16.mxu0 0
    %185 = vmatpush1.bf16.msra.mxu0 0
    %186 = vmatprep.subr.bf16.mxu0 0
    %187 = vmatpush1.bf16.msra.mxu0 0
    %188 = vmatprep.subr.bf16.mxu0 0
    %189 = vmatpush1.bf16.msra.mxu0 0
    %190 = vmatprep.subr.bf16.mxu0 0
    %191 = vmatpush1.bf16.msra.mxu0 0
    %192 = vmatprep.subr.bf16.mxu0 0
    %193 = vmatpush1.bf16.msra.mxu0 0
    %194 = vmatprep.subr.bf16.mxu0 0
    %195 = vmatpush1.bf16.msra.mxu0 0
    %196 = vmatprep.subr.bf16.mxu0 0
    %197 = vmatpush1.bf16.msra.mxu0 0
    %198 = vmatprep.subr.bf16.mxu0 0
    %199 = vmatpush1.bf16.msra.mxu0 0
    %200 = vmatprep.mubr.bf16.mxu0 0
    %201 = vmatmul.mubr.bf16.gmra.mrb[0].mxu0 %v145
    %v202 = vpop.f32.mrb[0].mxu0
    %v203 = vadd.f32 %v66, %v202
    %v204 = vpop.f32.mrb[0].mxu0
    %v205 = vadd.f32 %v70, %v204
    %v206 = vpop.f32.mrb[0].mxu0
    %v207 = vadd.f32 %v66, %v206
    %v208 = vpop.f32.mrb[0].mxu0
    %v209 = vadd.f32 %v70, %v208
    %210 = vmatprep.mubr.bf16.mxu0 0
    %211 = vmatmul.mubr.bf16.gmra.mrb[0].mxu0 %v148
    %v212 = vpop.f32.mrb[0].mxu0
    %v213 = vadd.f32 %v66, %v212
    %v214 = vpop.f32.mrb[0].mxu0
    %v215 = vadd.f32 %v70, %v214
    %v216 = vpop.f32.mrb[0].mxu0
    %v217 = vadd.f32 %v66, %v216
    %v218 = vpop.f32.mrb[0].mxu0
    %v219 = vadd.f32 %v70, %v218
    %220 = vmatprep.mubr.bf16.mxu0 0
    %221 = vmatmul.mubr.bf16.gmra.mrb[0].mxu0 %v151
    %v222 = vpop.f32.mrb[0].mxu0
    %v223 = vadd.f32 %v66, %v222
    %v224 = vpop.f32.mrb[0].mxu0
    %v225 = vadd.f32 %v70, %v224
    %v226 = vpop.f32.mrb[0].mxu0
    %v227 = vadd.f32 %v66, %v226
    %v228 = vpop.f32.mrb[0].mxu0
    %v229 = vadd.f32 %v70, %v228
    %230 = vmatprep.mubr.bf16.mxu0 0
    %231 = vmatmul.mubr.bf16.gmra.mrb[0].mxu0 %v154
    %v232 = vpop.f32.mrb[0].mxu0
    %v233 = vadd.f32 %v66, %v232
    %v234 = vpop.f32.mrb[0].mxu0
    %v235 = vadd.f32 %v70, %v234
    %v236 = vpop.f32.mrb[0].mxu0
    %v237 = vadd.f32 %v66, %v236
    %v238 = vpop.f32.mrb[0].mxu0
    %v239 = vadd.f32 %v70, %v238
    %240 = vmatprep.mubr.bf16.mxu0 0
    %241 = vmatmul.mubr.bf16.gmra.mrb[0].mxu0 %v157
    %v242 = vpop.f32.mrb[0].mxu0
    %v243 = vadd.f32 %v66, %v242
    %v244 = vpop.f32.mrb[0].mxu0
    %v245 = vadd.f32 %v70, %v244
    %v246 = vpop.f32.mrb[0].mxu0
    %v247 = vadd.f32 %v66, %v246
    %v248 = vpop.f32.mrb[0].mxu0
    %v249 = vadd.f32 %v70, %v248
    %250 = vmatprep.mubr.bf16.mxu0 0
    %251 = vmatmul.mubr.bf16.gmra.mrb[0].mxu0 %v160
    %v252 = vpop.f32.mrb[0].mxu0
    %v253 = vadd.f32 %v66, %v252
    %v254 = vpop.f32.mrb[0].mxu0
    %v255 = vadd.f32 %v70, %v254
    %v256 = vpop.f32.mrb[0].mxu0
    %v257 = vadd.f32 %v66, %v256
    %v258 = vpop.f32.mrb[0].mxu0
    %v259 = vadd.f32 %v70, %v258
    %260 = vmatprep.mubr.bf16.mxu0 0
    %261 = vmatmul.mubr.bf16.gmra.mrb[0].mxu0 %v163
    %v262 = vpop.f32.mrb[0].mxu0
    %v263 = vadd.f32 %v66, %v262
    %v264 = vpop.f32.mrb[0].mxu0
    %v265 = vadd.f32 %v70, %v264
    %v266 = vpop.f32.mrb[0].mxu0
    %v267 = vadd.f32 %v66, %v266
    %v268 = vpop.f32.mrb[0].mxu0
    %v269 = vadd.f32 %v70, %v268
    %270 = vmatprep.mubr.bf16.mxu0 0
    %271 = vmatmul.mubr.bf16.gmra.mrb[0].mxu0 %v166
    %v272 = vpop.f32.mrb[0].mxu0
    %v273 = vadd.f32 %v66, %v272
    %v274 = vpop.f32.mrb[0].mxu0
    %v275 = vadd.f32 %v70, %v274
    %v276 = vpop.f32.mrb[0].mxu0
    %v277 = vadd.f32 %v66, %v276
    %v278 = vpop.f32.mrb[0].mxu0
    %v279 = vadd.f32 %v70, %v278
    %280 = vdwg.mxu0
    %281 = vmatprep.subr.bf16.mxu0 %v138
    %282 = vmatpush1.bf16.msra.mxu0 %v137
    %283 = vmatprep.subr.bf16.mxu0 0
    %284 = vmatpush1.bf16.msra.mxu0 0
    %285 = vmatprep.subr.bf16.mxu0 0
    %286 = vmatpush1.bf16.msra.mxu0 0
    %287 = vmatprep.subr.bf16.mxu0 0
    %288 = vmatpush1.bf16.msra.mxu0 0
    %289 = vmatprep.subr.bf16.mxu0 0
    %290 = vmatpush1.bf16.msra.mxu0 0
    %291 = vmatprep.subr.bf16.mxu0 0
    %292 = vmatpush1.bf16.msra.mxu0 0
    %293 = vmatprep.subr.bf16.mxu0 0
    %294 = vmatpush1.bf16.msra.mxu0 0
    %295 = vmatprep.subr.bf16.mxu0 0
    %296 = vmatpush1.bf16.msra.mxu0 0
    %297 = vmatprep.subr.bf16.mxu0 0
    %298 = vmatpush1.bf16.msra.mxu0 0
    %299 = vmatprep.subr.bf16.mxu0 0
    %300 = vmatpush1.bf16.msra.mxu0 0
    %301 = vmatprep.subr.bf16.mxu0 0
    %302 = vmatpush1.bf16.msra.mxu0 0
    %303 = vmatprep.subr.bf16.mxu0 0
    %304 = vmatpush1.bf16.msra.mxu0 0
    %305 = vmatprep.subr.bf16.mxu0 0
    %306 = vmatpush1.bf16.msra.mxu0 0
    %307 = vmatprep.subr.bf16.mxu0 0
    %308 = vmatpush1.bf16.msra.mxu0 0
    %309 = vmatprep.subr.bf16.mxu0 0
    %310 = vmatpush1.bf16.msra.mxu0 0
    %311 = vmatprep.subr.bf16.mxu0 0
    %312 = vmatpush1.bf16.msra.mxu0 0
    %313 = vmatprep.mubr.bf16.mxu0 0
    %314 = vmatmul.mubr.bf16.gmra.mrb[0].mxu0 %v145
    %v315 = vpop.f32.mrb[0].mxu0
    %v316 = vadd.f32 %v74, %v315
    %v317 = vpop.f32.mrb[0].mxu0
    %v318 = vadd.f32 %v78, %v317
    %v319 = vpop.f32.mrb[0].mxu0
    %v320 = vadd.f32 %v74, %v319
    %v321 = vpop.f32.mrb[0].mxu0
    %v322 = vadd.f32 %v78, %v321
    %323 = vmatprep.mubr.bf16.mxu0 0
    %324 = vmatmul.mubr.bf16.gmra.mrb[0].mxu0 %v148
    %v325 = vpop.f32.mrb[0].mxu0
    %v326 = vadd.f32 %v74, %v325
    %v327 = vpop.f32.mrb[0].mxu0
    %v328 = vadd.f32 %v78, %v327
    %v329 = vpop.f32.mrb[0].mxu0
    %v330 = vadd.f32 %v74, %v329
    %v331 = vpop.f32.mrb[0].mxu0
    %v332 = vadd.f32 %v78, %v331
    %333 = vmatprep.mubr.bf16.mxu0 0
    %334 = vmatmul.mubr.bf16.gmra.mrb[0].mxu0 %v151
    %v335 = vpop.f32.mrb[0].mxu0
    %v336 = vadd.f32 %v74, %v335
    %v337 = vpop.f32.mrb[0].mxu0
    %v338 = vadd.f32 %v78, %v337
    %v339 = vpop.f32.mrb[0].mxu0
    %v340 = vadd.f32 %v74, %v339
    %v341 = vpop.f32.mrb[0].mxu0
    %v342 = vadd.f32 %v78, %v341
    %343 = vmatprep.mubr.bf16.mxu0 0
    %344 = vmatmul.mubr.bf16.gmra.mrb[0].mxu0 %v154
    %v345 = vpop.f32.mrb[0].mxu0
    %v346 = vadd.f32 %v74, %v345
    %v347 = vpop.f32.mrb[0].mxu0
    %v348 = vadd.f32 %v78, %v347
    %v349 = vpop.f32.mrb[0].mxu0
    %v350 = vadd.f32 %v74, %v349
    %v351 = vpop.f32.mrb[0].mxu0
    %v352 = vadd.f32 %v78, %v351
    %353 = vmatprep.mubr.bf16.mxu0 0
    %354 = vmatmul.mubr.bf16.gmra.mrb[0].mxu0 %v157
    %v355 = vpop.f32.mrb[0].mxu0
    %v356 = vadd.f32 %v74, %v355
    %v357 = vpop.f32.mrb[0].mxu0
    %v358 = vadd.f32 %v78, %v357
    %v359 = vpop.f32.mrb[0].mxu0
    %v360 = vadd.f32 %v74, %v359
    %v361 = vpop.f32.mrb[0].mxu0
    %v362 = vadd.f32 %v78, %v361
    %363 = vmatprep.mubr.bf16.mxu0 0
    %364 = vmatmul.mubr.bf16.gmra.mrb[0].mxu0 %v160
    %v365 = vpop.f32.mrb[0].mxu0
    %v366 = vadd.f32 %v74, %v365
    %v367 = vpop.f32.mrb[0].mxu0
    %v368 = vadd.f32 %v78, %v367
    %v369 = vpop.f32.mrb[0].mxu0
    %v370 = vadd.f32 %v74, %v369
    %v371 = vpop.f32.mrb[0].mxu0
    %v372 = vadd.f32 %v78, %v371
    %373 = vmatprep.mubr.bf16.mxu0 0
    %374 = vmatmul.mubr.bf16.gmra.mrb[0].mxu0 %v163
    %v375 = vpop.f32.mrb[0].mxu0
    %v376 = vadd.f32 %v74, %v375
    %v377 = vpop.f32.mrb[0].mxu0
    %v378 = vadd.f32 %v78, %v377
    %v379 = vpop.f32.mrb[0].mxu0
    %v380 = vadd.f32 %v74, %v379
    %v381 = vpop.f32.mrb[0].mxu0
    %v382 = vadd.f32 %v78, %v381
    %383 = vmatprep.mubr.bf16.mxu0 0
    %384 = vmatmul.mubr.bf16.gmra.mrb[0].mxu0 %v166
    %v385 = vpop.f32.mrb[0].mxu0
    %v386 = vadd.f32 %v74, %v385
    %v387 = vpop.f32.mrb[0].mxu0
    %v388 = vadd.f32 %v78, %v387
    %v389 = vpop.f32.mrb[0].mxu0
    %v390 = vadd.f32 %v74, %v389
    %v391 = vpop.f32.mrb[0].mxu0
    %v392 = vadd.f32 %v78, %v391
    %393 = vdwg.mxu0
    %394 = vst [vmem:[#allocation2] sm:$0xff] %v203
    %395 = vst [vmem:[#allocation2 + $0x8] sm:$0xff] %v205
    %396 = vst [vmem:[#allocation2 + $0x10] sm:$0xff] %v316
    %397 = vst [vmem:[#allocation2 + $0x18] sm:$0xff] %v318
    %398 = vst [vmem:[#allocation2 + $0x20] sm:$0xff] %v207
    %399 = vst [vmem:[#allocation2 + $0x28] sm:$0xff] %v209
    %400 = vst [vmem:[#allocation2 + $0x30] sm:$0xff] %v320
    %401 = vst [vmem:[#allocation2 + $0x38] sm:$0xff] %v322
    %402 = vst [vmem:[#allocation2 + $0x40] sm:$0xff] %v213
    %403 = vst [vmem:[#allocation2 + $0x48] sm:$0xff] %v215
    %404 = vst [vmem:[#allocation2 + $0x50] sm:$0xff] %v326
    %405 = vst [vmem:[#allocation2 + $0x58] sm:$0xff] %v328
    %406 = vst [vmem:[#allocation2 + $0x60] sm:$0xff] %v217
    %407 = vst [vmem:[#allocation2 + $0x68] sm:$0xff] %v219
    %408 = vst [vmem:[#allocation2 + $0x70] sm:$0xff] %v330
    %409 = vst [vmem:[#allocation2 + $0x78] sm:$0xff] %v332
    %410 = vst [vmem:[#allocation2 + $0x80] sm:$0xff] %v223
    %411 = vst [vmem:[#allocation2 + $0x88] sm:$0xff] %v225
    %412 = vst [vmem:[#allocation2 + $0x90] sm:$0xff] %v336
    %413 = vst [vmem:[#allocation2 + $0x98] sm:$0xff] %v338
    %414 = vst [vmem:[#allocation2 + $0xa0] sm:$0xff] %v227
    %415 = vst [vmem:[#allocation2 + $0xa8] sm:$0xff] %v229
    %416 = vst [vmem:[#allocation2 + $0xb0] sm:$0xff] %v340
    %417 = vst [vmem:[#allocation2 + $0xb8] sm:$0xff] %v342
    %418 = vst [vmem:[#allocation2 + $0xc0] sm:$0xff] %v233
    %419 = vst [vmem:[#allocation2 + $0xc8] sm:$0xff] %v235
    %420 = vst [vmem:[#allocation2 + $0xd0] sm:$0xff] %v346
    %421 = vst [vmem:[#allocation2 + $0xd8] sm:$0xff] %v348
    %422 = vst [vmem:[#allocation2 + $0xe0] sm:$0xff] %v237
    %423 = vst [vmem:[#allocation2 + $0xe8] sm:$0xff] %v239
    %424 = vst [vmem:[#allocation2 + $0xf0] sm:$0xff] %v350
    %425 = vst [vmem:[#allocation2 + $0xf8] sm:$0xff] %v352
    %426 = vst [vmem:[#allocation2 + $0x100] sm:$0xff] %v243
    %427 = vst [vmem:[#allocation2 + $0x108] sm:$0xff] %v245
    %428 = vst [vmem:[#allocation2 + $0x110] sm:$0xff] %v356
    %429 = vst [vmem:[#allocation2 + $0x118] sm:$0xff] %v358
    %430 = vst [vmem:[#allocation2 + $0x120] sm:$0xff] %v247
    %431 = vst [vmem:[#allocation2 + $0x128] sm:$0xff] %v249
    %432 = vst [vmem:[#allocation2 + $0x130] sm:$0xff] %v360
    %433 = vst [vmem:[#allocation2 + $0x138] sm:$0xff] %v362
    %434 = vst [vmem:[#allocation2 + $0x140] sm:$0xff] %v253
    %435 = vst [vmem:[#allocation2 + $0x148] sm:$0xff] %v255
    %436 = vst [vmem:[#allocation2 + $0x150] sm:$0xff] %v366
    %437 = vst [vmem:[#allocation2 + $0x158] sm:$0xff] %v368
    %438 = vst [vmem:[#allocation2 + $0x160] sm:$0xff] %v257
    %439 = vst [vmem:[#allocation2 + $0x168] sm:$0xff] %v259
    %440 = vst [vmem:[#allocation2 + $0x170] sm:$0xff] %v370
    %441 = vst [vmem:[#allocation2 + $0x178] sm:$0xff] %v372
    %442 = vst [vmem:[#allocation2 + $0x180] sm:$0xff] %v263
    %443 = vst [vmem:[#allocation2 + $0x188] sm:$0xff] %v265
    %444 = vst [vmem:[#allocation2 + $0x190] sm:$0xff] %v376
    %445 = vst [vmem:[#allocation2 + $0x198] sm:$0xff] %v378
    %446 = vst [vmem:[#allocation2 + $0x1a0] sm:$0xff] %v267
    %447 = vst [vmem:[#allocation2 + $0x1a8] sm:$0xff] %v269
    %448 = vst [vmem:[#allocation2 + $0x1b0] sm:$0xff] %v380
    %449 = vst [vmem:[#allocation2 + $0x1b8] sm:$0xff] %v382
    %450 = vst [vmem:[#allocation2 + $0x1c0] sm:$0xff] %v273
    %451 = vst [vmem:[#allocation2 + $0x1c8] sm:$0xff] %v275
    %452 = vst [vmem:[#allocation2 + $0x1d0] sm:$0xff] %v386
    %453 = vst [vmem:[#allocation2 + $0x1d8] sm:$0xff] %v388
    %454 = vst [vmem:[#allocation2 + $0x1e0] sm:$0xff] %v277
    %455 = vst [vmem:[#allocation2 + $0x1e8] sm:$0xff] %v279
    %456 = vst [vmem:[#allocation2 + $0x1f0] sm:$0xff] %v390
    %457 = vst [vmem:[#allocation2 + $0x1f8] sm:$0xff] %v392
    %v458 = vld [vmem:[#allocation5] sm:$0xff]
    %v459 = vld [vmem:[#allocation5 + $0x8] sm:$0xff]
    %v460 = vld [vmem:[#allocation5 + $0x10] sm:$0xff]
    %v461 = vld [vmem:[#allocation5 + $0x18] sm:$0xff]
    %v462 = vld [vmem:[#allocation5 + $0x20] sm:$0xff]
    %v463 = vld [vmem:[#allocation5 + $0x28] sm:$0xff]
    %v464 = vld [vmem:[#allocation5 + $0x30] sm:$0xff]
    %v465 = vld [vmem:[#allocation5 + $0x38] sm:$0xff]
    %v466 = vld [vmem:[#allocation5 + $0x40] sm:$0xff]
    %v467 = vld [vmem:[#allocation5 + $0x48] sm:$0xff]
    %v468 = vld [vmem:[#allocation5 + $0x50] sm:$0xff]
    %v469 = vld [vmem:[#allocation5 + $0x58] sm:$0xff]
    %v470 = vld [vmem:[#allocation5 + $0x60] sm:$0xff]
    %v471 = vld [vmem:[#allocation5 + $0x68] sm:$0xff]
    %v472 = vld [vmem:[#allocation5 + $0x70] sm:$0xff]
    %v473 = vld [vmem:[#allocation5 + $0x78] sm:$0xff]
    %v474 = vld [vmem:[#allocation5 + $0x80] sm:$0xff]
    %v475 = vld [vmem:[#allocation5 + $0x88] sm:$0xff]
    %v476 = vld [vmem:[#allocation5 + $0x90] sm:$0xff]
    %v477 = vld [vmem:[#allocation5 + $0x98] sm:$0xff]
    %v478 = vld [vmem:[#allocation5 + $0xa0] sm:$0xff]
    %v479 = vld [vmem:[#allocation5 + $0xa8] sm:$0xff]
    %v480 = vld [vmem:[#allocation5 + $0xb0] sm:$0xff]
    %v481 = vld [vmem:[#allocation5 + $0xb8] sm:$0xff]
    %v482 = vld [vmem:[#allocation5 + $0xc0] sm:$0xff]
    %v483 = vld [vmem:[#allocation5 + $0xc8] sm:$0xff]
    %v484 = vld [vmem:[#allocation5 + $0xd0] sm:$0xff]
    %v485 = vld [vmem:[#allocation5 + $0xd8] sm:$0xff]
    %v486 = vld [vmem:[#allocation5 + $0xe0] sm:$0xff]
    %v487 = vld [vmem:[#allocation5 + $0xe8] sm:$0xff]
    %v488 = vld [vmem:[#allocation5 + $0xf0] sm:$0xff]
    %v489 = vld [vmem:[#allocation5 + $0xf8] sm:$0xff]
    %s490 = smul.u32 0, 4
    %s491 = smul.addr %s490, 8
    %s492 = scalar_lea.vmem [#allocation2], %s491
    %v493 = vld [vmem:[%s492] sm:$0xff]
    %v494 = vld [vmem:[%s492 + $0x8] sm:$0xff]
    %v495 = vld [vmem:[%s492 + $0x10] sm:$0xff]
    %v496 = vld [vmem:[%s492 + $0x18] sm:$0xff]
    %v497 = vld [vmem:[%s492 + $0x20] sm:$0xff]
    %v498 = vld [vmem:[%s492 + $0x28] sm:$0xff]
    %v499 = vld [vmem:[%s492 + $0x30] sm:$0xff]
    %v500 = vld [vmem:[%s492 + $0x38] sm:$0xff]
    %v501 = vld [vmem:[#allocation3] sm:$0xff]
    %v502 = vld [vmem:[#allocation3 + $0x8] sm:$0xff]
    %v503 = vpack.c.bf16 %v502, %v501
    %v536 = vunpack.c.l.b16 %v458
    %v537 = vunpack.c.h.b16 %v458
    %v538 = vunpack.c.l.b16 %v459
    %v539 = vunpack.c.h.b16 %v459
    %v540 = vunpack.c.l.b16 %v460
    %v541 = vunpack.c.h.b16 %v460
    %v542 = vunpack.c.l.b16 %v461
    %v543 = vunpack.c.h.b16 %v461
    %v544 = vunpack.c.l.b16 %v462
    %v545 = vunpack.c.h.b16 %v462
    %v546 = vunpack.c.l.b16 %v463
    %v547 = vunpack.c.h.b16 %v463
    %v548 = vunpack.c.l.b16 %v464
    %v549 = vunpack.c.h.b16 %v464
    %v550 = vunpack.c.l.b16 %v465
    %v551 = vunpack.c.h.b16 %v465
    %v552 = vunpack.c.l.b16 %v466
    %v553 = vunpack.c.h.b16 %v466
    %v554 = vunpack.c.l.b16 %v467
    %v555 = vunpack.c.h.b16 %v467
    %v556 = vunpack.c.l.b16 %v468
    %v557 = vunpack.c.h.b16 %v468
    %v558 = vunpack.c.l.b16 %v469
    %v559 = vunpack.c.h.b16 %v469
    %v560 = vunpack.c.l.b16 %v470
    %v561 = vunpack.c.h.b16 %v470
    %v562 = vunpack.c.l.b16 %v471
    %v563 = vunpack.c.h.b16 %v471
    %v564 = vunpack.c.l.b16 %v472
    %v565 = vunpack.c.h.b16 %v472
    %v566 = vunpack.c.l.b16 %v473
    %v567 = vunpack.c.h.b16 %v473
    %v568 = vunpack.c.l.b16 %v474
    %v569 = vunpack.c.h.b16 %v474
    %v570 = vunpack.c.l.b16 %v475
    %v571 = vunpack.c.h.b16 %v475
    %v572 = vunpack.c.l.b16 %v476
    %v573 = vunpack.c.h.b16 %v476
    %v574 = vunpack.c.l.b16 %v477
    %v575 = vunpack.c.h.b16 %v477
    %v576 = vunpack.c.l.b16 %v478
    %v577 = vunpack.c.h.b16 %v478
    %v578 = vunpack.c.l.b16 %v479
    %v579 = vunpack.c.h.b16 %v479
    %v580 = vunpack.c.l.b16 %v480
    %v581 = vunpack.c.h.b16 %v480
    %v582 = vunpack.c.l.b16 %v481
    %v583 = vunpack.c.h.b16 %v481
    %v584 = vunpack.c.l.b16 %v482
    %v585 = vunpack.c.h.b16 %v482
    %v586 = vunpack.c.l.b16 %v483
    %v587 = vunpack.c.h.b16 %v483
    %v588 = vunpack.c.l.b16 %v484
    %v589 = vunpack.c.h.b16 %v484
    %v590 = vunpack.c.l.b16 %v485
    %v591 = vunpack.c.h.b16 %v485
    %v592 = vunpack.c.l.b16 %v486
    %v593 = vunpack.c.h.b16 %v486
    %v594 = vunpack.c.l.b16 %v487
    %v595 = vunpack.c.h.b16 %v487
    %v596 = vunpack.c.l.b16 %v488
    %v597 = vunpack.c.h.b16 %v488
    %v598 = vunpack.c.l.b16 %v489
    %v599 = vunpack.c.h.b16 %v489
    %v600 = vpack.c.b16 %v540, %v536
    %v601 = vpack.c.b16 %v541, %v537
    %v602 = vpack.c.b16 %v542, %v538
    %v603 = vpack.c.b16 %v543, %v539
    %v604 = vpack.c.b16 %v548, %v544
    %v605 = vpack.c.b16 %v549, %v545
    %v606 = vpack.c.b16 %v550, %v546
    %v607 = vpack.c.b16 %v551, %v547
    %v608 = vpack.c.b16 %v556, %v552
    %v609 = vpack.c.b16 %v557, %v553
    %v610 = vpack.c.b16 %v558, %v554
    %v611 = vpack.c.b16 %v559, %v555
    %v612 = vpack.c.b16 %v564, %v560
    %v613 = vpack.c.b16 %v565, %v561
    %v614 = vpack.c.b16 %v566, %v562
    %v615 = vpack.c.b16 %v567, %v563
    %v616 = vpack.c.b16 %v572, %v568
    %v617 = vpack.c.b16 %v573, %v569
    %v618 = vpack.c.b16 %v574, %v570
    %v619 = vpack.c.b16 %v575, %v571
    %v620 = vpack.c.b16 %v580, %v576
    %v621 = vpack.c.b16 %v581, %v577
    %v622 = vpack.c.b16 %v582, %v578
    %v623 = vpack.c.b16 %v583, %v579
    %v624 = vpack.c.b16 %v588, %v584
    %v625 = vpack.c.b16 %v589, %v585
    %v626 = vpack.c.b16 %v590, %v586
    %v627 = vpack.c.b16 %v591, %v587
    %v628 = vpack.c.b16 %v596, %v592
    %v629 = vpack.c.b16 %v597, %v593
    %v630 = vpack.c.b16 %v598, %v594
    %v631 = vpack.c.b16 %v599, %v595
    %664 = vmatprep.subr.bf16.mxu0 %v601
    %665 = vmatpush1.bf16.msra.mxu0 %v600
    %666 = vmatprep.subr.bf16.mxu0 %v605
    %667 = vmatpush1.bf16.msra.mxu0 %v604
    %668 = vmatprep.subr.bf16.mxu0 %v609
    %669 = vmatpush1.bf16.msra.mxu0 %v608
    %670 = vmatprep.subr.bf16.mxu0 %v613
    %671 = vmatpush1.bf16.msra.mxu0 %v612
    %672 = vmatprep.subr.bf16.mxu0 %v617
    %673 = vmatpush1.bf16.msra.mxu0 %v616
    %674 = vmatprep.subr.bf16.mxu0 %v621
    %675 = vmatpush1.bf16.msra.mxu0 %v620
    %676 = vmatprep.subr.bf16.mxu0 %v625
    %677 = vmatpush1.bf16.msra.mxu0 %v624
    %678 = vmatprep.subr.bf16.mxu0 %v629
    %679 = vmatpush1.bf16.msra.mxu0 %v628
    %680 = vmatprep.subr.bf16.mxu0 0
    %681 = vmatpush1.bf16.msra.mxu0 0
    %682 = vmatprep.subr.bf16.mxu0 0
    %683 = vmatpush1.bf16.msra.mxu0 0
    %684 = vmatprep.subr.bf16.mxu0 0
    %685 = vmatpush1.bf16.msra.mxu0 0
    %686 = vmatprep.subr.bf16.mxu0 0
    %687 = vmatpush1.bf16.msra.mxu0 0
    %688 = vmatprep.subr.bf16.mxu0 0
    %689 = vmatpush1.bf16.msra.mxu0 0
    %690 = vmatprep.subr.bf16.mxu0 0
    %691 = vmatpush1.bf16.msra.mxu0 0
    %692 = vmatprep.subr.bf16.mxu0 0
    %693 = vmatpush1.bf16.msra.mxu0 0
    %694 = vmatprep.subr.bf16.mxu0 0
    %695 = vmatpush1.bf16.msra.mxu0 0
    %696 = vmatprep.mubr.bf16.mxu0 0
    %697 = vmatmul.mubr.bf16.gmra.mrb[0].mxu0 %v503
    %v698 = vpop.f32.mrb[0].mxu0
    %v699 = vadd.f32 0.0, %v698
    %v700 = vpop.f32.mrb[0].mxu0
    %v701 = vadd.f32 0.0, %v700
    %v702 = vpop.f32.mrb[0].mxu0
    %v703 = vadd.f32 0.0, %v702
    %v704 = vpop.f32.mrb[0].mxu0
    %v705 = vadd.f32 0.0, %v704
    %706 = vdwg.mxu0
    %707 = vmatprep.subr.bf16.mxu0 %v603
    %708 = vmatpush1.bf16.msra.mxu0 %v602
    %709 = vmatprep.subr.bf16.mxu0 %v607
    %710 = vmatpush1.bf16.msra.mxu0 %v606
    %711 = vmatprep.subr.bf16.mxu0 %v611
    %712 = vmatpush1.bf16.msra.mxu0 %v610
    %713 = vmatprep.subr.bf16.mxu0 %v615
    %714 = vmatpush1.bf16.msra.mxu0 %v614
    %715 = vmatprep.subr.bf16.mxu0 %v619
    %716 = vmatpush1.bf16.msra.mxu0 %v618
    %717 = vmatprep.subr.bf16.mxu0 %v623
    %718 = vmatpush1.bf16.msra.mxu0 %v622
    %719 = vmatprep.subr.bf16.mxu0 %v627
    %720 = vmatpush1.bf16.msra.mxu0 %v626
    %721 = vmatprep.subr.bf16.mxu0 %v631
    %722 = vmatpush1.bf16.msra.mxu0 %v630
    %723 = vmatprep.subr.bf16.mxu0 0
    %724 = vmatpush1.bf16.msra.mxu0 0
    %725 = vmatprep.subr.bf16.mxu0 0
    %726 = vmatpush1.bf16.msra.mxu0 0
    %727 = vmatprep.subr.bf16.mxu0 0
    %728 = vmatpush1.bf16.msra.mxu0 0
    %729 = vmatprep.subr.bf16.mxu0 0
    %730 = vmatpush1.bf16.msra.mxu0 0
    %731 = vmatprep.subr.bf16.mxu0 0
    %732 = vmatpush1.bf16.msra.mxu0 0
    %733 = vmatprep.subr.bf16.mxu0 0
    %734 = vmatpush1.bf16.msra.mxu0 0
    %735 = vmatprep.subr.bf16.mxu0 0
    %736 = vmatpush1.bf16.msra.mxu0 0
    %737 = vmatprep.subr.bf16.mxu0 0
    %738 = vmatpush1.bf16.msra.mxu0 0
    %739 = vmatprep.mubr.bf16.mxu0 0
    %740 = vmatmul.mubr.bf16.gmra.mrb[0].mxu0 %v503
    %v741 = vpop.f32.mrb[0].mxu0
    %v742 = vadd.f32 0.0, %v741
    %v743 = vpop.f32.mrb[0].mxu0
    %v744 = vadd.f32 0.0, %v743
    %v745 = vpop.f32.mrb[0].mxu0
    %v746 = vadd.f32 0.0, %v745
    %v747 = vpop.f32.mrb[0].mxu0
    %v748 = vadd.f32 0.0, %v747
    %749 = vdwg.mxu0
    %v750 = vadd.f32 %v493, %v699
    %v751 = vadd.f32 %v494, %v701
    %v752 = vadd.f32 %v495, %v742
    %v753 = vadd.f32 %v496, %v744
    %v754 = vadd.f32 %v497, %v703
    %v755 = vadd.f32 %v498, %v705
    %v756 = vadd.f32 %v499, %v746
    %v757 = vadd.f32 %v500, %v748
    %v758 = vmul.f32 %v750, 0.5
    %v759 = vmul.f32 %v754, 0.5
    %v760 = vtanh.pop %v758
    %v761 = vtanh.pop %v759
    %v762 = vmul.f32 %v760, 0.5
    %v763 = vmul.f32 %v761, 0.5
    %v764 = vadd.f32 %v762, 0.5
    %v765 = vadd.f32 %v763, 0.5
    %v766 = vmul.f32 %v751, 0.5
    %v767 = vmul.f32 %v755, 0.5
    %v768 = vtanh.pop %v766
    %v769 = vtanh.pop %v767
    %v770 = vmul.f32 %v768, 0.5
    %v771 = vmul.f32 %v769, 0.5
    %v772 = vadd.f32 %v770, 0.5
    %v773 = vadd.f32 %v771, 0.5
    %v774 = vtanh.pop %v752
    %v775 = vtanh.pop %v756
    %v776 = vmul.f32 %v753, 0.5
    %v777 = vmul.f32 %v757, 0.5
    %v778 = vtanh.pop %v776
    %v779 = vtanh.pop %v777
    %v780 = vmul.f32 %v778, 0.5
    %v781 = vmul.f32 %v779, 0.5
    %v782 = vadd.f32 %v780, 0.5
    %v783 = vadd.f32 %v781, 0.5
    %v784 = vld [vmem:[#allocation4] sm:$0xff]
    %v785 = vld [vmem:[#allocation4 + $0x8] sm:$0xff]
    %v786 = vmul.f32 %v772, %v784
    %v787 = vmul.f32 %v773, %v785
    %v788 = vmul.f32 %v764, %v774
    %v789 = vmul.f32 %v765, %v775
    %v790 = vadd.f32 %v786, %v788
    %v791 = vadd.f32 %v787, %v789
    %v792 = vtanh.pop %v790
    %v793 = vtanh.pop %v791
    %v794 = vmul.f32 %v782, %v792
    %v795 = vmul.f32 %v783, %v793
    %796 = vst [vmem:[#allocation4] sm:$0xff] %v790
    %797 = vst [vmem:[#allocation4 + $0x8] sm:$0xff] %v791
    %798 = vst [vmem:[#allocation3] sm:$0xff] %v794
    %799 = vst [vmem:[#allocation3 + $0x8] sm:$0xff] %v795
    %v800 = vpack.c.bf16 %v795, %v794
    %v802 = vunpack.c.l.b16 %v800
    %v803 = vunpack.c.h.b16 %v800
    %v804 = vpack.c.b16 %v802, %v802
    %v805 = vpack.c.b16 %v803, %v803
    %808 = vst [vmem:[#allocation8] sm:$0xf] %v804
    %809 = vst [vmem:[#allocation8 + $0x4] sm:$0xf] %v805
    %s810 = smul.u32 2, 4
    %s811 = smul.addr %s810, 8
    %s812 = scalar_lea.vmem [#allocation2], %s811
    %v813 = vld [vmem:[%s812] sm:$0xff]
    %v814 = vld [vmem:[%s812 + $0x8] sm:$0xff]
    %v815 = vld [vmem:[%s812 + $0x10] sm:$0xff]
    %v816 = vld [vmem:[%s812 + $0x18] sm:$0xff]
    %v817 = vld [vmem:[%s812 + $0x20] sm:$0xff]
    %v818 = vld [vmem:[%s812 + $0x28] sm:$0xff]
    %v819 = vld [vmem:[%s812 + $0x30] sm:$0xff]
    %v820 = vld [vmem:[%s812 + $0x38] sm:$0xff]
    %v821 = vld [vmem:[#allocation3] sm:$0xff]
    %v822 = vld [vmem:[#allocation3 + $0x8] sm:$0xff]
    %v823 = vpack.c.bf16 %v822, %v821
    %824 = vmatprep.subr.bf16.mxu0 %v601
    %825 = vmatpush1.bf16.msra.mxu0 %v600
    %826 = vmatprep.subr.bf16.mxu0 %v605
    %827 = vmatpush1.bf16.msra.mxu0 %v604
    %828 = vmatprep.subr.bf16.mxu0 %v609
    %829 = vmatpush1.bf16.msra.mxu0 %v608
    %830 = vmatprep.subr.bf16.mxu0 %v613
    %831 = vmatpush1.bf16.msra.mxu0 %v612
    %832 = vmatprep.subr.bf16.mxu0 %v617
    %833 = vmatpush1.bf16.msra.mxu0 %v616
    %834 = vmatprep.subr.bf16.mxu0 %v621
    %835 = vmatpush1.bf16.msra.mxu0 %v620
    %836 = vmatprep.subr.bf16.mxu0 %v625
    %837 = vmatpush1.bf16.msra.mxu0 %v624
    %838 = vmatprep.subr.bf16.mxu0 %v629
    %839 = vmatpush1.bf16.msra.mxu0 %v628
    %840 = vmatprep.subr.bf16.mxu0 0
    %841 = vmatpush1.bf16.msra.mxu0 0
    %842 = vmatprep.subr.bf16.mxu0 0
    %843 = vmatpush1.bf16.msra.mxu0 0
    %844 = vmatprep.subr.bf16.mxu0 0
    %845 = vmatpush1.bf16.msra.mxu0 0
    %846 = vmatprep.subr.bf16.mxu0 0
    %847 = vmatpush1.bf16.msra.mxu0 0
    %848 = vmatprep.subr.bf16.mxu0 0
    %849 = vmatpush1.bf16.msra.mxu0 0
    %850 = vmatprep.subr.bf16.mxu0 0
    %851 = vmatpush1.bf16.msra.mxu0 0
    %852 = vmatprep.subr.bf16.mxu0 0
    %853 = vmatpush1.bf16.msra.mxu0 0
    %854 = vmatprep.subr.bf16.mxu0 0
    %855 = vmatpush1.bf16.msra.mxu0 0
    %856 = vmatprep.mubr.bf16.mxu0 0
    %857 = vmatmul.mubr.bf16.gmra.mrb[0].mxu0 %v823
    %v858 = vpop.f32.mrb[0].mxu0
    %v859 = vadd.f32 0.0, %v858
    %v860 = vpop.f32.mrb[0].mxu0
    %v861 = vadd.f32 0.0, %v860
    %v862 = vpop.f32.mrb[0].mxu0
    %v863 = vadd.f32 0.0, %v862
    %v864 = vpop.f32.mrb[0].mxu0
    %v865 = vadd.f32 0.0, %v864
    %866 = vdwg.mxu0
    %867 = vmatprep.subr.bf16.mxu0 %v603
    %868 = vmatpush1.bf16.msra.mxu0 %v602
    %869 = vmatprep.subr.bf16.mxu0 %v607
    %870 = vmatpush1.bf16.msra.mxu0 %v606
    %871 = vmatprep.subr.bf16.mxu0 %v611
    %872 = vmatpush1.bf16.msra.mxu0 %v610
    %873 = vmatprep.subr.bf16.mxu0 %v615
    %874 = vmatpush1.bf16.msra.mxu0 %v614
    %875 = vmatprep.subr.bf16.mxu0 %v619
    %876 = vmatpush1.bf16.msra.mxu0 %v618
    %877 = vmatprep.subr.bf16.mxu0 %v623
    %878 = vmatpush1.bf16.msra.mxu0 %v622
    %879 = vmatprep.subr.bf16.mxu0 %v627
    %880 = vmatpush1.bf16.msra.mxu0 %v626
    %881 = vmatprep.subr.bf16.mxu0 %v631
    %882 = vmatpush1.bf16.msra.mxu0 %v630
    %883 = vmatprep.subr.bf16.mxu0 0
    %884 = vmatpush1.bf16.msra.mxu0 0
    %885 = vmatprep.subr.bf16.mxu0 0
    %886 = vmatpush1.bf16.msra.mxu0 0
    %887 = vmatprep.subr.bf16.mxu0 0
    %888 = vmatpush1.bf16.msra.mxu0 0
    %889 = vmatprep.subr.bf16.mxu0 0
    %890 = vmatpush1.bf16.msra.mxu0 0
    %891 = vmatprep.subr.bf16.mxu0 0
    %892 = vmatpush1.bf16.msra.mxu0 0
    %893 = vmatprep.subr.bf16.mxu0 0
    %894 = vmatpush1.bf16.msra.mxu0 0
    %895 = vmatprep.subr.bf16.mxu0 0
    %896 = vmatpush1.bf16.msra.mxu0 0
    %897 = vmatprep.subr.bf16.mxu0 0
    %898 = vmatpush1.bf16.msra.mxu0 0
    %899 = vmatprep.mubr.bf16.mxu0 0
    %900 = vmatmul.mubr.bf16.gmra.mrb[0].mxu0 %v823
    %v901 = vpop.f32.mrb[0].mxu0
    %v902 = vadd.f32 0.0, %v901
    %v903 = vpop.f32.mrb[0].mxu0
    %v904 = vadd.f32 0.0, %v903
    %v905 = vpop.f32.mrb[0].mxu0
    %v906 = vadd.f32 0.0, %v905
    %v907 = vpop.f32.mrb[0].mxu0
    %v908 = vadd.f32 0.0, %v907
    %909 = vdwg.mxu0
    %v910 = vadd.f32 %v813, %v859
    %v911 = vadd.f32 %v814, %v861
    %v912 = vadd.f32 %v815, %v902
    %v913 = vadd.f32 %v816, %v904
    %v914 = vadd.f32 %v817, %v863
    %v915 = vadd.f32 %v818, %v865
    %v916 = vadd.f32 %v819, %v906
    %v917 = vadd.f32 %v820, %v908
    %v918 = vmul.f32 %v910, 0.5
    %v919 = vmul.f32 %v914, 0.5
    %v920 = vtanh.pop %v918
    %v921 = vtanh.pop %v919
    %v922 = vmul.f32 %v920, 0.5
    %v923 = vmul.f32 %v921, 0.5
    %v924 = vadd.f32 %v922, 0.5
    %v925 = vadd.f32 %v923, 0.5
    %v926 = vmul.f32 %v911, 0.5
    %v927 = vmul.f32 %v915, 0.5
    %v928 = vtanh.pop %v926
    %v929 = vtanh.pop %v927
    %v930 = vmul.f32 %v928, 0.5
    %v931 = vmul.f32 %v929, 0.5
    %v932 = vadd.f32 %v930, 0.5
    %v933 = vadd.f32 %v931, 0.5
    %v934 = vtanh.pop %v912
    %v935 = vtanh.pop %v916
    %v936 = vmul.f32 %v913, 0.5
    %v937 = vmul.f32 %v917, 0.5
    %v938 = vtanh.pop %v936
    %v939 = vtanh.pop %v937
    %v940 = vmul.f32 %v938, 0.5
    %v941 = vmul.f32 %v939, 0.5
    %v942 = vadd.f32 %v940, 0.5
    %v943 = vadd.f32 %v941, 0.5
    %v944 = vld [vmem:[#allocation4] sm:$0xff]
    %v945 = vld [vmem:[#allocation4 + $0x8] sm:$0xff]
    %v946 = vmul.f32 %v932, %v944
    %v947 = vmul.f32 %v933, %v945
    %v948 = vmul.f32 %v924, %v934
    %v949 = vmul.f32 %v925, %v935
    %v950 = vadd.f32 %v946, %v948
    %v951 = vadd.f32 %v947, %v949
    %v952 = vtanh.pop %v950
    %v953 = vtanh.pop %v951
    %v954 = vmul.f32 %v942, %v952
    %v955 = vmul.f32 %v943, %v953
    %956 = vst [vmem:[#allocation4] sm:$0xff] %v950
    %957 = vst [vmem:[#allocation4 + $0x8] sm:$0xff] %v951
    %958 = vst [vmem:[#allocation3] sm:$0xff] %v954
    %959 = vst [vmem:[#allocation3 + $0x8] sm:$0xff] %v955
    %v960 = vpack.c.bf16 %v955, %v954
    %v962 = vunpack.c.l.b16 %v960
    %v963 = vunpack.c.h.b16 %v960
    %v964 = vpack.c.b16 %v962, %v962
    %v965 = vpack.c.b16 %v963, %v963
    %s968 = scalar_lea.vmem [#allocation8], 8
    %969 = vst [vmem:[%s968] sm:$0xf] %v964
    %970 = vst [vmem:[%s968 + $0x4] sm:$0xf] %v965
    %s971 = smul.u32 4, 4
    %s972 = smul.addr %s971, 8
    %s973 = scalar_lea.vmem [#allocation2], %s972
    %v974 = vld [vmem:[%s973] sm:$0xff]
    %v975 = vld [vmem:[%s973 + $0x8] sm:$0xff]
    %v976 = vld [vmem:[%s973 + $0x10] sm:$0xff]
    %v977 = vld [vmem:[%s973 + $0x18] sm:$0xff]
    %v978 = vld [vmem:[%s973 + $0x20] sm:$0xff]
    %v979 = vld [vmem:[%s973 + $0x28] sm:$0xff]
    %v980 = vld [vmem:[%s973 + $0x30] sm:$0xff]
    %v981 = vld [vmem:[%s973 + $0x38] sm:$0xff]
    %v982 = vld [vmem:[#allocation3] sm:$0xff]
    %v983 = vld [vmem:[#allocation3 + $0x8] sm:$0xff]
    %v984 = vpack.c.bf16 %v983, %v982
    %985 = vmatprep.subr.bf16.mxu0 %v601
    %986 = vmatpush1.bf16.msra.mxu0 %v600
    %987 = vmatprep.subr.bf16.mxu0 %v605
    %988 = vmatpush1.bf16.msra.mxu0 %v604
    %989 = vmatprep.subr.bf16.mxu0 %v609
    %990 = vmatpush1.bf16.msra.mxu0 %v608
    %991 = vmatprep.subr.bf16.mxu0 %v613
    %992 = vmatpush1.bf16.msra.mxu0 %v612
    %993 = vmatprep.subr.bf16.mxu0 %v617
    %994 = vmatpush1.bf16.msra.mxu0 %v616
    %995 = vmatprep.subr.bf16.mxu0 %v621
    %996 = vmatpush1.bf16.msra.mxu0 %v620
    %997 = vmatprep.subr.bf16.mxu0 %v625
    %998 = vmatpush1.bf16.msra.mxu0 %v624
    %999 = vmatprep.subr.bf16.mxu0 %v629
    %1000 = vmatpush1.bf16.msra.mxu0 %v628
    %1001 = vmatprep.subr.bf16.mxu0 0
    %1002 = vmatpush1.bf16.msra.mxu0 0
    %1003 = vmatprep.subr.bf16.mxu0 0
    %1004 = vmatpush1.bf16.msra.mxu0 0
    %1005 = vmatprep.subr.bf16.mxu0 0
    %1006 = vmatpush1.bf16.msra.mxu0 0
    %1007 = vmatprep.subr.bf16.mxu0 0
    %1008 = vmatpush1.bf16.msra.mxu0 0
    %1009 = vmatprep.subr.bf16.mxu0 0
    %1010 = vmatpush1.bf16.msra.mxu0 0
    %1011 = vmatprep.subr.bf16.mxu0 0
    %1012 = vmatpush1.bf16.msra.mxu0 0
    %1013 = vmatprep.subr.bf16.mxu0 0
    %1014 = vmatpush1.bf16.msra.mxu0 0
    %1015 = vmatprep.subr.bf16.mxu0 0
    %1016 = vmatpush1.bf16.msra.mxu0 0
    %1017 = vmatprep.mubr.bf16.mxu0 0
    %1018 = vmatmul.mubr.bf16.gmra.mrb[0].mxu0 %v984
    %v1019 = vpop.f32.mrb[0].mxu0
    %v1020 = vadd.f32 0.0, %v1019
    %v1021 = vpop.f32.mrb[0].mxu0
    %v1022 = vadd.f32 0.0, %v1021
    %v1023 = vpop.f32.mrb[0].mxu0
    %v1024 = vadd.f32 0.0, %v1023
    %v1025 = vpop.f32.mrb[0].mxu0
    %v1026 = vadd.f32 0.0, %v1025
    %1027 = vdwg.mxu0
    %1028 = vmatprep.subr.bf16.mxu0 %v603
    %1029 = vmatpush1.bf16.msra.mxu0 %v602
    %1030 = vmatprep.subr.bf16.mxu0 %v607
    %1031 = vmatpush1.bf16.msra.mxu0 %v606
    %1032 = vmatprep.subr.bf16.mxu0 %v611
    %1033 = vmatpush1.bf16.msra.mxu0 %v610
    %1034 = vmatprep.subr.bf16.mxu0 %v615
    %1035 = vmatpush1.bf16.msra.mxu0 %v614
    %1036 = vmatprep.subr.bf16.mxu0 %v619
    %1037 = vmatpush1.bf16.msra.mxu0 %v618
    %1038 = vmatprep.subr.bf16.mxu0 %v623
    %1039 = vmatpush1.bf16.msra.mxu0 %v622
    %1040 = vmatprep.subr.bf16.mxu0 %v627
    %1041 = vmatpush1.bf16.msra.mxu0 %v626
    %1042 = vmatprep.subr.bf16.mxu0 %v631
    %1043 = vmatpush1.bf16.msra.mxu0 %v630
    %1044 = vmatprep.subr.bf16.mxu0 0
    %1045 = vmatpush1.bf16.msra.mxu0 0
    %1046 = vmatprep.subr.bf16.mxu0 0
    %1047 = vmatpush1.bf16.msra.mxu0 0
    %1048 = vmatprep.subr.bf16.mxu0 0
    %1049 = vmatpush1.bf16.msra.mxu0 0
    %1050 = vmatprep.subr.bf16.mxu0 0
    %1051 = vmatpush1.bf16.msra.mxu0 0
    %1052 = vmatprep.subr.bf16.mxu0 0
    %1053 = vmatpush1.bf16.msra.mxu0 0
    %1054 = vmatprep.subr.bf16.mxu0 0
    %1055 = vmatpush1.bf16.msra.mxu0 0
    %1056 = vmatprep.subr.bf16.mxu0 0
    %1057 = vmatpush1.bf16.msra.mxu0 0
    %1058 = vmatprep.subr.bf16.mxu0 0
    %1059 = vmatpush1.bf16.msra.mxu0 0
    %1060 = vmatprep.mubr.bf16.mxu0 0
    %1061 = vmatmul.mubr.bf16.gmra.mrb[0].mxu0 %v984
    %v1062 = vpop.f32.mrb[0].mxu0
    %v1063 = vadd.f32 0.0, %v1062
    %v1064 = vpop.f32.mrb[0].mxu0
    %v1065 = vadd.f32 0.0, %v1064
    %v1066 = vpop.f32.mrb[0].mxu0
    %v1067 = vadd.f32 0.0, %v1066
    %v1068 = vpop.f32.mrb[0].mxu0
    %v1069 = vadd.f32 0.0, %v1068
    %1070 = vdwg.mxu0
    %v1071 = vadd.f32 %v974, %v1020
    %v1072 = vadd.f32 %v975, %v1022
    %v1073 = vadd.f32 %v976, %v1063
    %v1074 = vadd.f32 %v977, %v1065
    %v1075 = vadd.f32 %v978, %v1024
    %v1076 = vadd.f32 %v979, %v1026
    %v1077 = vadd.f32 %v980, %v1067
    %v1078 = vadd.f32 %v981, %v1069
    %v1079 = vmul.f32 %v1071, 0.5
    %v1080 = vmul.f32 %v1075, 0.5
    %v1081 = vtanh.pop %v1079
    %v1082 = vtanh.pop %v1080
    %v1083 = vmul.f32 %v1081, 0.5
    %v1084 = vmul.f32 %v1082, 0.5
    %v1085 = vadd.f32 %v1083, 0.5
    %v1086 = vadd.f32 %v1084, 0.5
    %v1087 = vmul.f32 %v1072, 0.5
    %v1088 = vmul.f32 %v1076, 0.5
    %v1089 = vtanh.pop %v1087
    %v1090 = vtanh.pop %v1088
    %v1091 = vmul.f32 %v1089, 0.5
    %v1092 = vmul.f32 %v1090, 0.5
    %v1093 = vadd.f32 %v1091, 0.5
    %v1094 = vadd.f32 %v1092, 0.5
    %v1095 = vtanh.pop %v1073
    %v1096 = vtanh.pop %v1077
    %v1097 = vmul.f32 %v1074, 0.5
    %v1098 = vmul.f32 %v1078, 0.5
    %v1099 = vtanh.pop %v1097
    %v1100 = vtanh.pop %v1098
    %v1101 = vmul.f32 %v1099, 0.5
    %v1102 = vmul.f32 %v1100, 0.5
    %v1103 = vadd.f32 %v1101, 0.5
    %v1104 = vadd.f32 %v1102, 0.5
    %v1105 = vld [vmem:[#allocation4] sm:$0xff]
    %v1106 = vld [vmem:[#allocation4 + $0x8] sm:$0xff]
    %v1107 = vmul.f32 %v1093, %v1105
    %v1108 = vmul.f32 %v1094, %v1106
    %v1109 = vmul.f32 %v1085, %v1095
    %v1110 = vmul.f32 %v1086, %v1096
    %v1111 = vadd.f32 %v1107, %v1109
    %v1112 = vadd.f32 %v1108, %v1110
    %v1113 = vtanh.pop %v1111
    %v1114 = vtanh.pop %v1112
    %v1115 = vmul.f32 %v1103, %v1113
    %v1116 = vmul.f32 %v1104, %v1114
    %1117 = vst [vmem:[#allocation4] sm:$0xff] %v1111
    %1118 = vst [vmem:[#allocation4 + $0x8] sm:$0xff] %v1112
    %1119 = vst [vmem:[#allocation3] sm:$0xff] %v1115
    %1120 = vst [vmem:[#allocation3 + $0x8] sm:$0xff] %v1116
    %v1121 = vpack.c.bf16 %v1116, %v1115
    %v1123 = vunpack.c.l.b16 %v1121
    %v1124 = vunpack.c.h.b16 %v1121
    %v1125 = vpack.c.b16 %v1123, %v1123
    %v1126 = vpack.c.b16 %v1124, %v1124
    %s1129 = scalar_lea.vmem [#allocation8], 16
    %1130 = vst [vmem:[%s1129] sm:$0xf] %v1125
    %1131 = vst [vmem:[%s1129 + $0x4] sm:$0xf] %v1126
    %s1132 = smul.u32 6, 4
    %s1133 = smul.addr %s1132, 8
    %s1134 = scalar_lea.vmem [#allocation2], %s1133
    %v1135 = vld [vmem:[%s1134] sm:$0xff]
    %v1136 = vld [vmem:[%s1134 + $0x8] sm:$0xff]
    %v1137 = vld [vmem:[%s1134 + $0x10] sm:$0xff]
    %v1138 = vld [vmem:[%s1134 + $0x18] sm:$0xff]
    %v1139 = vld [vmem:[%s1134 + $0x20] sm:$0xff]
    %v1140 = vld [vmem:[%s1134 + $0x28] sm:$0xff]
    %v1141 = vld [vmem:[%s1134 + $0x30] sm:$0xff]
    %v1142 = vld [vmem:[%s1134 + $0x38] sm:$0xff]
    %v1143 = vld [vmem:[#allocation3] sm:$0xff]
    %v1144 = vld [vmem:[#allocation3 + $0x8] sm:$0xff]
    %v1145 = vpack.c.bf16 %v1144, %v1143
    %1146 = vmatprep.subr.bf16.mxu0 %v601
    %1147 = vmatpush1.bf16.msra.mxu0 %v600
    %1148 = vmatprep.subr.bf16.mxu0 %v605
    %1149 = vmatpush1.bf16.msra.mxu0 %v604
    %1150 = vmatprep.subr.bf16.mxu0 %v609
    %1151 = vmatpush1.bf16.msra.mxu0 %v608
    %1152 = vmatprep.subr.bf16.mxu0 %v613
    %1153 = vmatpush1.bf16.msra.mxu0 %v612
    %1154 = vmatprep.subr.bf16.mxu0 %v617
    %1155 = vmatpush1.bf16.msra.mxu0 %v616
    %1156 = vmatprep.subr.bf16.mxu0 %v621
    %1157 = vmatpush1.bf16.msra.mxu0 %v620
    %1158 = vmatprep.subr.bf16.mxu0 %v625
    %1159 = vmatpush1.bf16.msra.mxu0 %v624
    %1160 = vmatprep.subr.bf16.mxu0 %v629
    %1161 = vmatpush1.bf16.msra.mxu0 %v628
    %1162 = vmatprep.subr.bf16.mxu0 0
    %1163 = vmatpush1.bf16.msra.mxu0 0
    %1164 = vmatprep.subr.bf16.mxu0 0
    %1165 = vmatpush1.bf16.msra.mxu0 0
    %1166 = vmatprep.subr.bf16.mxu0 0
    %1167 = vmatpush1.bf16.msra.mxu0 0
    %1168 = vmatprep.subr.bf16.mxu0 0
    %1169 = vmatpush1.bf16.msra.mxu0 0
    %1170 = vmatprep.subr.bf16.mxu0 0
    %1171 = vmatpush1.bf16.msra.mxu0 0
    %1172 = vmatprep.subr.bf16.mxu0 0
    %1173 = vmatpush1.bf16.msra.mxu0 0
    %1174 = vmatprep.subr.bf16.mxu0 0
    %1175 = vmatpush1.bf16.msra.mxu0 0
    %1176 = vmatprep.subr.bf16.mxu0 0
    %1177 = vmatpush1.bf16.msra.mxu0 0
    %1178 = vmatprep.mubr.bf16.mxu0 0
    %1179 = vmatmul.mubr.bf16.gmra.mrb[0].mxu0 %v1145
    %v1180 = vpop.f32.mrb[0].mxu0
    %v1181 = vadd.f32 0.0, %v1180
    %v1182 = vpop.f32.mrb[0].mxu0
    %v1183 = vadd.f32 0.0, %v1182
    %v1184 = vpop.f32.mrb[0].mxu0
    %v1185 = vadd.f32 0.0, %v1184
    %v1186 = vpop.f32.mrb[0].mxu0
    %v1187 = vadd.f32 0.0, %v1186
    %1188 = vdwg.mxu0
    %1189 = vmatprep.subr.bf16.mxu0 %v603
    %1190 = vmatpush1.bf16.msra.mxu0 %v602
    %1191 = vmatprep.subr.bf16.mxu0 %v607
    %1192 = vmatpush1.bf16.msra.mxu0 %v606
    %1193 = vmatprep.subr.bf16.mxu0 %v611
    %1194 = vmatpush1.bf16.msra.mxu0 %v610
    %1195 = vmatprep.subr.bf16.mxu0 %v615
    %1196 = vmatpush1.bf16.msra.mxu0 %v614
    %1197 = vmatprep.subr.bf16.mxu0 %v619
    %1198 = vmatpush1.bf16.msra.mxu0 %v618
    %1199 = vmatprep.subr.bf16.mxu0 %v623
    %1200 = vmatpush1.bf16.msra.mxu0 %v622
    %1201 = vmatprep.subr.bf16.mxu0 %v627
    %1202 = vmatpush1.bf16.msra.mxu0 %v626
    %1203 = vmatprep.subr.bf16.mxu0 %v631
    %1204 = vmatpush1.bf16.msra.mxu0 %v630
    %1205 = vmatprep.subr.bf16.mxu0 0
    %1206 = vmatpush1.bf16.msra.mxu0 0
    %1207 = vmatprep.subr.bf16.mxu0 0
    %1208 = vmatpush1.bf16.msra.mxu0 0
    %1209 = vmatprep.subr.bf16.mxu0 0
    %1210 = vmatpush1.bf16.msra.mxu0 0
    %1211 = vmatprep.subr.bf16.mxu0 0
    %1212 = vmatpush1.bf16.msra.mxu0 0
    %1213 = vmatprep.subr.bf16.mxu0 0
    %1214 = vmatpush1.bf16.msra.mxu0 0
    %1215 = vmatprep.subr.bf16.mxu0 0
    %1216 = vmatpush1.bf16.msra.mxu0 0
    %1217 = vmatprep.subr.bf16.mxu0 0
    %1218 = vmatpush1.bf16.msra.mxu0 0
    %1219 = vmatprep.subr.bf16.mxu0 0
    %1220 = vmatpush1.bf16.msra.mxu0 0
    %1221 = vmatprep.mubr.bf16.mxu0 0
    %1222 = vmatmul.mubr.bf16.gmra.mrb[0].mxu0 %v1145
    %v1223 = vpop.f32.mrb[0].mxu0
    %v1224 = vadd.f32 0.0, %v1223
    %v1225 = vpop.f32.mrb[0].mxu0
    %v1226 = vadd.f32 0.0, %v1225
    %v1227 = vpop.f32.mrb[0].mxu0
    %v1228 = vadd.f32 0.0, %v1227
    %v1229 = vpop.f32.mrb[0].mxu0
    %v1230 = vadd.f32 0.0, %v1229
    %1231 = vdwg.mxu0
    %v1232 = vadd.f32 %v1135, %v1181
    %v1233 = vadd.f32 %v1136, %v1183
    %v1234 = vadd.f32 %v1137, %v1224
    %v1235 = vadd.f32 %v1138, %v1226
    %v1236 = vadd.f32 %v1139, %v1185
    %v1237 = vadd.f32 %v1140, %v1187
    %v1238 = vadd.f32 %v1141, %v1228
    %v1239 = vadd.f32 %v1142, %v1230
    %v1240 = vmul.f32 %v1232, 0.5
    %v1241 = vmul.f32 %v1236, 0.5
    %v1242 = vtanh.pop %v1240
    %v1243 = vtanh.pop %v1241
    %v1244 = vmul.f32 %v1242, 0.5
    %v1245 = vmul.f32 %v1243, 0.5
    %v1246 = vadd.f32 %v1244, 0.5
    %v1247 = vadd.f32 %v1245, 0.5
    %v1248 = vmul.f32 %v1233, 0.5
    %v1249 = vmul.f32 %v1237, 0.5
    %v1250 = vtanh.pop %v1248
    %v1251 = vtanh.pop %v1249
    %v1252 = vmul.f32 %v1250, 0.5
    %v1253 = vmul.f32 %v1251, 0.5
    %v1254 = vadd.f32 %v1252, 0.5
    %v1255 = vadd.f32 %v1253, 0.5
    %v1256 = vtanh.pop %v1234
    %v1257 = vtanh.pop %v1238
    %v1258 = vmul.f32 %v1235, 0.5
    %v1259 = vmul.f32 %v1239, 0.5
    %v1260 = vtanh.pop %v1258
    %v1261 = vtanh.pop %v1259
    %v1262 = vmul.f32 %v1260, 0.5
    %v1263 = vmul.f32 %v1261, 0.5
    %v1264 = vadd.f32 %v1262, 0.5
    %v1265 = vadd.f32 %v1263, 0.5
    %v1266 = vld [vmem:[#allocation4] sm:$0xff]
    %v1267 = vld [vmem:[#allocation4 + $0x8] sm:$0xff]
    %v1268 = vmul.f32 %v1254, %v1266
    %v1269 = vmul.f32 %v1255, %v1267
    %v1270 = vmul.f32 %v1246, %v1256
    %v1271 = vmul.f32 %v1247, %v1257
    %v1272 = vadd.f32 %v1268, %v1270
    %v1273 = vadd.f32 %v1269, %v1271
    %v1274 = vtanh.pop %v1272
    %v1275 = vtanh.pop %v1273
    %v1276 = vmul.f32 %v1264, %v1274
    %v1277 = vmul.f32 %v1265, %v1275
    %1278 = vst [vmem:[#allocation4] sm:$0xff] %v1272
    %1279 = vst [vmem:[#allocation4 + $0x8] sm:$0xff] %v1273
    %1280 = vst [vmem:[#allocation3] sm:$0xff] %v1276
    %1281 = vst [vmem:[#allocation3 + $0x8] sm:$0xff] %v1277
    %v1282 = vpack.c.bf16 %v1277, %v1276
    %v1284 = vunpack.c.l.b16 %v1282
    %v1285 = vunpack.c.h.b16 %v1282
    %v1286 = vpack.c.b16 %v1284, %v1284
    %v1287 = vpack.c.b16 %v1285, %v1285
    %s1290 = scalar_lea.vmem [#allocation8], 24
    %1291 = vst [vmem:[%s1290] sm:$0xf] %v1286
    %1292 = vst [vmem:[%s1290 + $0x4] sm:$0xf] %v1287
    %s1293 = smul.u32 8, 4
    %s1294 = smul.addr %s1293, 8
    %s1295 = scalar_lea.vmem [#allocation2], %s1294
    %v1296 = vld [vmem:[%s1295] sm:$0xff]
    %v1297 = vld [vmem:[%s1295 + $0x8] sm:$0xff]
    %v1298 = vld [vmem:[%s1295 + $0x10] sm:$0xff]
    %v1299 = vld [vmem:[%s1295 + $0x18] sm:$0xff]
    %v1300 = vld [vmem:[%s1295 + $0x20] sm:$0xff]
    %v1301 = vld [vmem:[%s1295 + $0x28] sm:$0xff]
    %v1302 = vld [vmem:[%s1295 + $0x30] sm:$0xff]
    %v1303 = vld [vmem:[%s1295 + $0x38] sm:$0xff]
    %v1304 = vld [vmem:[#allocation3] sm:$0xff]
    %v1305 = vld [vmem:[#allocation3 + $0x8] sm:$0xff]
    %v1306 = vpack.c.bf16 %v1305, %v1304
    %1307 = vmatprep.subr.bf16.mxu0 %v601
    %1308 = vmatpush1.bf16.msra.mxu0 %v600
    %1309 = vmatprep.subr.bf16.mxu0 %v605
    %1310 = vmatpush1.bf16.msra.mxu0 %v604
    %1311 = vmatprep.subr.bf16.mxu0 %v609
    %1312 = vmatpush1.bf16.msra.mxu0 %v608
    %1313 = vmatprep.subr.bf16.mxu0 %v613
    %1314 = vmatpush1.bf16.msra.mxu0 %v612
    %1315 = vmatprep.subr.bf16.mxu0 %v617
    %1316 = vmatpush1.bf16.msra.mxu0 %v616
    %1317 = vmatprep.subr.bf16.mxu0 %v621
    %1318 = vmatpush1.bf16.msra.mxu0 %v620
    %1319 = vmatprep.subr.bf16.mxu0 %v625
    %1320 = vmatpush1.bf16.msra.mxu0 %v624
    %1321 = vmatprep.subr.bf16.mxu0 %v629
    %1322 = vmatpush1.bf16.msra.mxu0 %v628
    %1323 = vmatprep.subr.bf16.mxu0 0
    %1324 = vmatpush1.bf16.msra.mxu0 0
    %1325 = vmatprep.subr.bf16.mxu0 0
    %1326 = vmatpush1.bf16.msra.mxu0 0
    %1327 = vmatprep.subr.bf16.mxu0 0
    %1328 = vmatpush1.bf16.msra.mxu0 0
    %1329 = vmatprep.subr.bf16.mxu0 0
    %1330 = vmatpush1.bf16.msra.mxu0 0
    %1331 = vmatprep.subr.bf16.mxu0 0
    %1332 = vmatpush1.bf16.msra.mxu0 0
    %1333 = vmatprep.subr.bf16.mxu0 0
    %1334 = vmatpush1.bf16.msra.mxu0 0
    %1335 = vmatprep.subr.bf16.mxu0 0
    %1336 = vmatpush1.bf16.msra.mxu0 0
    %1337 = vmatprep.subr.bf16.mxu0 0
    %1338 = vmatpush1.bf16.msra.mxu0 0
    %1339 = vmatprep.mubr.bf16.mxu0 0
    %1340 = vmatmul.mubr.bf16.gmra.mrb[0].mxu0 %v1306
    %v1341 = vpop.f32.mrb[0].mxu0
    %v1342 = vadd.f32 0.0, %v1341
    %v1343 = vpop.f32.mrb[0].mxu0
    %v1344 = vadd.f32 0.0, %v1343
    %v1345 = vpop.f32.mrb[0].mxu0
    %v1346 = vadd.f32 0.0, %v1345
    %v1347 = vpop.f32.mrb[0].mxu0
    %v1348 = vadd.f32 0.0, %v1347
    %1349 = vdwg.mxu0
    %1350 = vmatprep.subr.bf16.mxu0 %v603
    %1351 = vmatpush1.bf16.msra.mxu0 %v602
    %1352 = vmatprep.subr.bf16.mxu0 %v607
    %1353 = vmatpush1.bf16.msra.mxu0 %v606
    %1354 = vmatprep.subr.bf16.mxu0 %v611
    %1355 = vmatpush1.bf16.msra.mxu0 %v610
    %1356 = vmatprep.subr.bf16.mxu0 %v615
    %1357 = vmatpush1.bf16.msra.mxu0 %v614
    %1358 = vmatprep.subr.bf16.mxu0 %v619
    %1359 = vmatpush1.bf16.msra.mxu0 %v618
    %1360 = vmatprep.subr.bf16.mxu0 %v623
    %1361 = vmatpush1.bf16.msra.mxu0 %v622
    %1362 = vmatprep.subr.bf16.mxu0 %v627
    %1363 = vmatpush1.bf16.msra.mxu0 %v626
    %1364 = vmatprep.subr.bf16.mxu0 %v631
    %1365 = vmatpush1.bf16.msra.mxu0 %v630
    %1366 = vmatprep.subr.bf16.mxu0 0
    %1367 = vmatpush1.bf16.msra.mxu0 0
    %1368 = vmatprep.subr.bf16.mxu0 0
    %1369 = vmatpush1.bf16.msra.mxu0 0
    %1370 = vmatprep.subr.bf16.mxu0 0
    %1371 = vmatpush1.bf16.msra.mxu0 0
    %1372 = vmatprep.subr.bf16.mxu0 0
    %1373 = vmatpush1.bf16.msra.mxu0 0
    %1374 = vmatprep.subr.bf16.mxu0 0
    %1375 = vmatpush1.bf16.msra.mxu0 0
    %1376 = vmatprep.subr.bf16.mxu0 0
    %1377 = vmatpush1.bf16.msra.mxu0 0
    %1378 = vmatprep.subr.bf16.mxu0 0
    %1379 = vmatpush1.bf16.msra.mxu0 0
    %1380 = vmatprep.subr.bf16.mxu0 0
    %1381 = vmatpush1.bf16.msra.mxu0 0
    %1382 = vmatprep.mubr.bf16.mxu0 0
    %1383 = vmatmul.mubr.bf16.gmra.mrb[0].mxu0 %v1306
    %v1384 = vpop.f32.mrb[0].mxu0
    %v1385 = vadd.f32 0.0, %v1384
    %v1386 = vpop.f32.mrb[0].mxu0
    %v1387 = vadd.f32 0.0, %v1386
    %v1388 = vpop.f32.mrb[0].mxu0
    %v1389 = vadd.f32 0.0, %v1388
    %v1390 = vpop.f32.mrb[0].mxu0
    %v1391 = vadd.f32 0.0, %v1390
    %1392 = vdwg.mxu0
    %v1393 = vadd.f32 %v1296, %v1342
    %v1394 = vadd.f32 %v1297, %v1344
    %v1395 = vadd.f32 %v1298, %v1385
    %v1396 = vadd.f32 %v1299, %v1387
    %v1397 = vadd.f32 %v1300, %v1346
    %v1398 = vadd.f32 %v1301, %v1348
    %v1399 = vadd.f32 %v1302, %v1389
    %v1400 = vadd.f32 %v1303, %v1391
    %v1401 = vmul.f32 %v1393, 0.5
    %v1402 = vmul.f32 %v1397, 0.5
    %v1403 = vtanh.pop %v1401
    %v1404 = vtanh.pop %v1402
    %v1405 = vmul.f32 %v1403, 0.5
    %v1406 = vmul.f32 %v1404, 0.5
    %v1407 = vadd.f32 %v1405, 0.5
    %v1408 = vadd.f32 %v1406, 0.5
    %v1409 = vmul.f32 %v1394, 0.5
    %v1410 = vmul.f32 %v1398, 0.5
    %v1411 = vtanh.pop %v1409
    %v1412 = vtanh.pop %v1410
    %v1413 = vmul.f32 %v1411, 0.5
    %v1414 = vmul.f32 %v1412, 0.5
    %v1415 = vadd.f32 %v1413, 0.5
    %v1416 = vadd.f32 %v1414, 0.5
    %v1417 = vtanh.pop %v1395
    %v1418 = vtanh.pop %v1399
    %v1419 = vmul.f32 %v1396, 0.5
    %v1420 = vmul.f32 %v1400, 0.5
    %v1421 = vtanh.pop %v1419
    %v1422 = vtanh.pop %v1420
    %v1423 = vmul.f32 %v1421, 0.5
    %v1424 = vmul.f32 %v1422, 0.5
    %v1425 = vadd.f32 %v1423, 0.5
    %v1426 = vadd.f32 %v1424, 0.5
    %v1427 = vld [vmem:[#allocation4] sm:$0xff]
    %v1428 = vld [vmem:[#allocation4 + $0x8] sm:$0xff]
    %v1429 = vmul.f32 %v1415, %v1427
    %v1430 = vmul.f32 %v1416, %v1428
    %v1431 = vmul.f32 %v1407, %v1417
    %v1432 = vmul.f32 %v1408, %v1418
    %v1433 = vadd.f32 %v1429, %v1431
    %v1434 = vadd.f32 %v1430, %v1432
    %v1435 = vtanh.pop %v1433
    %v1436 = vtanh.pop %v1434
    %v1437 = vmul.f32 %v1425, %v1435
    %v1438 = vmul.f32 %v1426, %v1436
    %1439 = vst [vmem:[#allocation4] sm:$0xff] %v1433
    %1440 = vst [vmem:[#allocation4 + $0x8] sm:$0xff] %v1434
    %1441 = vst [vmem:[#allocation3] sm:$0xff] %v1437
    %1442 = vst [vmem:[#allocation3 + $0x8] sm:$0xff] %v1438
    %v1443 = vpack.c.bf16 %v1438, %v1437
    %v1445 = vunpack.c.l.b16 %v1443
    %v1446 = vunpack.c.h.b16 %v1443
    %v1447 = vpack.c.b16 %v1445, %v1445
    %v1448 = vpack.c.b16 %v1446, %v1446
    %s1451 = scalar_lea.vmem [#allocation8], 32
    %1452 = vst [vmem:[%s1451] sm:$0xf] %v1447
    %1453 = vst [vmem:[%s1451 + $0x4] sm:$0xf] %v1448
    %s1454 = smul.u32 10, 4
    %s1455 = smul.addr %s1454, 8
    %s1456 = scalar_lea.vmem [#allocation2], %s1455
    %v1457 = vld [vmem:[%s1456] sm:$0xff]
    %v1458 = vld [vmem:[%s1456 + $0x8] sm:$0xff]
    %v1459 = vld [vmem:[%s1456 + $0x10] sm:$0xff]
    %v1460 = vld [vmem:[%s1456 + $0x18] sm:$0xff]
    %v1461 = vld [vmem:[%s1456 + $0x20] sm:$0xff]
    %v1462 = vld [vmem:[%s1456 + $0x28] sm:$0xff]
    %v1463 = vld [vmem:[%s1456 + $0x30] sm:$0xff]
    %v1464 = vld [vmem:[%s1456 + $0x38] sm:$0xff]
    %v1465 = vld [vmem:[#allocation3] sm:$0xff]
    %v1466 = vld [vmem:[#allocation3 + $0x8] sm:$0xff]
    %v1467 = vpack.c.bf16 %v1466, %v1465
    %1468 = vmatprep.subr.bf16.mxu0 %v601
    %1469 = vmatpush1.bf16.msra.mxu0 %v600
    %1470 = vmatprep.subr.bf16.mxu0 %v605
    %1471 = vmatpush1.bf16.msra.mxu0 %v604
    %1472 = vmatprep.subr.bf16.mxu0 %v609
    %1473 = vmatpush1.bf16.msra.mxu0 %v608
    %1474 = vmatprep.subr.bf16.mxu0 %v613
    %1475 = vmatpush1.bf16.msra.mxu0 %v612
    %1476 = vmatprep.subr.bf16.mxu0 %v617
    %1477 = vmatpush1.bf16.msra.mxu0 %v616
    %1478 = vmatprep.subr.bf16.mxu0 %v621
    %1479 = vmatpush1.bf16.msra.mxu0 %v620
    %1480 = vmatprep.subr.bf16.mxu0 %v625
    %1481 = vmatpush1.bf16.msra.mxu0 %v624
    %1482 = vmatprep.subr.bf16.mxu0 %v629
    %1483 = vmatpush1.bf16.msra.mxu0 %v628
    %1484 = vmatprep.subr.bf16.mxu0 0
    %1485 = vmatpush1.bf16.msra.mxu0 0
    %1486 = vmatprep.subr.bf16.mxu0 0
    %1487 = vmatpush1.bf16.msra.mxu0 0
    %1488 = vmatprep.subr.bf16.mxu0 0
    %1489 = vmatpush1.bf16.msra.mxu0 0
    %1490 = vmatprep.subr.bf16.mxu0 0
    %1491 = vmatpush1.bf16.msra.mxu0 0
    %1492 = vmatprep.subr.bf16.mxu0 0
    %1493 = vmatpush1.bf16.msra.mxu0 0
    %1494 = vmatprep.subr.bf16.mxu0 0
    %1495 = vmatpush1.bf16.msra.mxu0 0
    %1496 = vmatprep.subr.bf16.mxu0 0
    %1497 = vmatpush1.bf16.msra.mxu0 0
    %1498 = vmatprep.subr.bf16.mxu0 0
    %1499 = vmatpush1.bf16.msra.mxu0 0
    %1500 = vmatprep.mubr.bf16.mxu0 0
    %1501 = vmatmul.mubr.bf16.gmra.mrb[0].mxu0 %v1467
    %v1502 = vpop.f32.mrb[0].mxu0
    %v1503 = vadd.f32 0.0, %v1502
    %v1504 = vpop.f32.mrb[0].mxu0
    %v1505 = vadd.f32 0.0, %v1504
    %v1506 = vpop.f32.mrb[0].mxu0
    %v1507 = vadd.f32 0.0, %v1506
    %v1508 = vpop.f32.mrb[0].mxu0
    %v1509 = vadd.f32 0.0, %v1508
    %1510 = vdwg.mxu0
    %1511 = vmatprep.subr.bf16.mxu0 %v603
    %1512 = vmatpush1.bf16.msra.mxu0 %v602
    %1513 = vmatprep.subr.bf16.mxu0 %v607
    %1514 = vmatpush1.bf16.msra.mxu0 %v606
    %1515 = vmatprep.subr.bf16.mxu0 %v611
    %1516 = vmatpush1.bf16.msra.mxu0 %v610
    %1517 = vmatprep.subr.bf16.mxu0 %v615
    %1518 = vmatpush1.bf16.msra.mxu0 %v614
    %1519 = vmatprep.subr.bf16.mxu0 %v619
    %1520 = vmatpush1.bf16.msra.mxu0 %v618
    %1521 = vmatprep.subr.bf16.mxu0 %v623
    %1522 = vmatpush1.bf16.msra.mxu0 %v622
    %1523 = vmatprep.subr.bf16.mxu0 %v627
    %1524 = vmatpush1.bf16.msra.mxu0 %v626
    %1525 = vmatprep.subr.bf16.mxu0 %v631
    %1526 = vmatpush1.bf16.msra.mxu0 %v630
    %1527 = vmatprep.subr.bf16.mxu0 0
    %1528 = vmatpush1.bf16.msra.mxu0 0
    %1529 = vmatprep.subr.bf16.mxu0 0
    %1530 = vmatpush1.bf16.msra.mxu0 0
    %1531 = vmatprep.subr.bf16.mxu0 0
    %1532 = vmatpush1.bf16.msra.mxu0 0
    %1533 = vmatprep.subr.bf16.mxu0 0
    %1534 = vmatpush1.bf16.msra.mxu0 0
    %1535 = vmatprep.subr.bf16.mxu0 0
    %1536 = vmatpush1.bf16.msra.mxu0 0
    %1537 = vmatprep.subr.bf16.mxu0 0
    %1538 = vmatpush1.bf16.msra.mxu0 0
    %1539 = vmatprep.subr.bf16.mxu0 0
    %1540 = vmatpush1.bf16.msra.mxu0 0
    %1541 = vmatprep.subr.bf16.mxu0 0
    %1542 = vmatpush1.bf16.msra.mxu0 0
    %1543 = vmatprep.mubr.bf16.mxu0 0
    %1544 = vmatmul.mubr.bf16.gmra.mrb[0].mxu0 %v1467
    %v1545 = vpop.f32.mrb[0].mxu0
    %v1546 = vadd.f32 0.0, %v1545
    %v1547 = vpop.f32.mrb[0].mxu0
    %v1548 = vadd.f32 0.0, %v1547
    %v1549 = vpop.f32.mrb[0].mxu0
    %v1550 = vadd.f32 0.0, %v1549
    %v1551 = vpop.f32.mrb[0].mxu0
    %v1552 = vadd.f32 0.0, %v1551
    %1553 = vdwg.mxu0
    %v1554 = vadd.f32 %v1457, %v1503
    %v1555 = vadd.f32 %v1458, %v1505
    %v1556 = vadd.f32 %v1459, %v1546
    %v1557 = vadd.f32 %v1460, %v1548
    %v1558 = vadd.f32 %v1461, %v1507
    %v1559 = vadd.f32 %v1462, %v1509
    %v1560 = vadd.f32 %v1463, %v1550
    %v1561 = vadd.f32 %v1464, %v1552
    %v1562 = vmul.f32 %v1554, 0.5
    %v1563 = vmul.f32 %v1558, 0.5
    %v1564 = vtanh.pop %v1562
    %v1565 = vtanh.pop %v1563
    %v1566 = vmul.f32 %v1564, 0.5
    %v1567 = vmul.f32 %v1565, 0.5
    %v1568 = vadd.f32 %v1566, 0.5
    %v1569 = vadd.f32 %v1567, 0.5
    %v1570 = vmul.f32 %v1555, 0.5
    %v1571 = vmul.f32 %v1559, 0.5
    %v1572 = vtanh.pop %v1570
    %v1573 = vtanh.pop %v1571
    %v1574 = vmul.f32 %v1572, 0.5
    %v1575 = vmul.f32 %v1573, 0.5
    %v1576 = vadd.f32 %v1574, 0.5
    %v1577 = vadd.f32 %v1575, 0.5
    %v1578 = vtanh.pop %v1556
    %v1579 = vtanh.pop %v1560
    %v1580 = vmul.f32 %v1557, 0.5
    %v1581 = vmul.f32 %v1561, 0.5
    %v1582 = vtanh.pop %v1580
    %v1583 = vtanh.pop %v1581
    %v1584 = vmul.f32 %v1582, 0.5
    %v1585 = vmul.f32 %v1583, 0.5
    %v1586 = vadd.f32 %v1584, 0.5
    %v1587 = vadd.f32 %v1585, 0.5
    %v1588 = vld [vmem:[#allocation4] sm:$0xff]
    %v1589 = vld [vmem:[#allocation4 + $0x8] sm:$0xff]
    %v1590 = vmul.f32 %v1576, %v1588
    %v1591 = vmul.f32 %v1577, %v1589
    %v1592 = vmul.f32 %v1568, %v1578
    %v1593 = vmul.f32 %v1569, %v1579
    %v1594 = vadd.f32 %v1590, %v1592
    %v1595 = vadd.f32 %v1591, %v1593
    %v1596 = vtanh.pop %v1594
    %v1597 = vtanh.pop %v1595
    %v1598 = vmul.f32 %v1586, %v1596
    %v1599 = vmul.f32 %v1587, %v1597
    %1600 = vst [vmem:[#allocation4] sm:$0xff] %v1594
    %1601 = vst [vmem:[#allocation4 + $0x8] sm:$0xff] %v1595
    %1602 = vst [vmem:[#allocation3] sm:$0xff] %v1598
    %1603 = vst [vmem:[#allocation3 + $0x8] sm:$0xff] %v1599
    %v1604 = vpack.c.bf16 %v1599, %v1598
    %v1606 = vunpack.c.l.b16 %v1604
    %v1607 = vunpack.c.h.b16 %v1604
    %v1608 = vpack.c.b16 %v1606, %v1606
    %v1609 = vpack.c.b16 %v1607, %v1607
    %s1612 = scalar_lea.vmem [#allocation8], 40
    %1613 = vst [vmem:[%s1612] sm:$0xf] %v1608
    %1614 = vst [vmem:[%s1612 + $0x4] sm:$0xf] %v1609
    %s1615 = smul.u32 12, 4
    %s1616 = smul.addr %s1615, 8
    %s1617 = scalar_lea.vmem [#allocation2], %s1616
    %v1618 = vld [vmem:[%s1617] sm:$0xff]
    %v1619 = vld [vmem:[%s1617 + $0x8] sm:$0xff]
    %v1620 = vld [vmem:[%s1617 + $0x10] sm:$0xff]
    %v1621 = vld [vmem:[%s1617 + $0x18] sm:$0xff]
    %v1622 = vld [vmem:[%s1617 + $0x20] sm:$0xff]
    %v1623 = vld [vmem:[%s1617 + $0x28] sm:$0xff]
    %v1624 = vld [vmem:[%s1617 + $0x30] sm:$0xff]
    %v1625 = vld [vmem:[%s1617 + $0x38] sm:$0xff]
    %v1626 = vld [vmem:[#allocation3] sm:$0xff]
    %v1627 = vld [vmem:[#allocation3 + $0x8] sm:$0xff]
    %v1628 = vpack.c.bf16 %v1627, %v1626
    %1629 = vmatprep.subr.bf16.mxu0 %v601
    %1630 = vmatpush1.bf16.msra.mxu0 %v600
    %1631 = vmatprep.subr.bf16.mxu0 %v605
    %1632 = vmatpush1.bf16.msra.mxu0 %v604
    %1633 = vmatprep.subr.bf16.mxu0 %v609
    %1634 = vmatpush1.bf16.msra.mxu0 %v608
    %1635 = vmatprep.subr.bf16.mxu0 %v613
    %1636 = vmatpush1.bf16.msra.mxu0 %v612
    %1637 = vmatprep.subr.bf16.mxu0 %v617
    %1638 = vmatpush1.bf16.msra.mxu0 %v616
    %1639 = vmatprep.subr.bf16.mxu0 %v621
    %1640 = vmatpush1.bf16.msra.mxu0 %v620
    %1641 = vmatprep.subr.bf16.mxu0 %v625
    %1642 = vmatpush1.bf16.msra.mxu0 %v624
    %1643 = vmatprep.subr.bf16.mxu0 %v629
    %1644 = vmatpush1.bf16.msra.mxu0 %v628
    %1645 = vmatprep.subr.bf16.mxu0 0
    %1646 = vmatpush1.bf16.msra.mxu0 0
    %1647 = vmatprep.subr.bf16.mxu0 0
    %1648 = vmatpush1.bf16.msra.mxu0 0
    %1649 = vmatprep.subr.bf16.mxu0 0
    %1650 = vmatpush1.bf16.msra.mxu0 0
    %1651 = vmatprep.subr.bf16.mxu0 0
    %1652 = vmatpush1.bf16.msra.mxu0 0
    %1653 = vmatprep.subr.bf16.mxu0 0
    %1654 = vmatpush1.bf16.msra.mxu0 0
    %1655 = vmatprep.subr.bf16.mxu0 0
    %1656 = vmatpush1.bf16.msra.mxu0 0
    %1657 = vmatprep.subr.bf16.mxu0 0
    %1658 = vmatpush1.bf16.msra.mxu0 0
    %1659 = vmatprep.subr.bf16.mxu0 0
    %1660 = vmatpush1.bf16.msra.mxu0 0
    %1661 = vmatprep.mubr.bf16.mxu0 0
    %1662 = vmatmul.mubr.bf16.gmra.mrb[0].mxu0 %v1628
    %v1663 = vpop.f32.mrb[0].mxu0
    %v1664 = vadd.f32 0.0, %v1663
    %v1665 = vpop.f32.mrb[0].mxu0
    %v1666 = vadd.f32 0.0, %v1665
    %v1667 = vpop.f32.mrb[0].mxu0
    %v1668 = vadd.f32 0.0, %v1667
    %v1669 = vpop.f32.mrb[0].mxu0
    %v1670 = vadd.f32 0.0, %v1669
    %1671 = vdwg.mxu0
    %1672 = vmatprep.subr.bf16.mxu0 %v603
    %1673 = vmatpush1.bf16.msra.mxu0 %v602
    %1674 = vmatprep.subr.bf16.mxu0 %v607
    %1675 = vmatpush1.bf16.msra.mxu0 %v606
    %1676 = vmatprep.subr.bf16.mxu0 %v611
    %1677 = vmatpush1.bf16.msra.mxu0 %v610
    %1678 = vmatprep.subr.bf16.mxu0 %v615
    %1679 = vmatpush1.bf16.msra.mxu0 %v614
    %1680 = vmatprep.subr.bf16.mxu0 %v619
    %1681 = vmatpush1.bf16.msra.mxu0 %v618
    %1682 = vmatprep.subr.bf16.mxu0 %v623
    %1683 = vmatpush1.bf16.msra.mxu0 %v622
    %1684 = vmatprep.subr.bf16.mxu0 %v627
    %1685 = vmatpush1.bf16.msra.mxu0 %v626
    %1686 = vmatprep.subr.bf16.mxu0 %v631
    %1687 = vmatpush1.bf16.msra.mxu0 %v630
    %1688 = vmatprep.subr.bf16.mxu0 0
    %1689 = vmatpush1.bf16.msra.mxu0 0
    %1690 = vmatprep.subr.bf16.mxu0 0
    %1691 = vmatpush1.bf16.msra.mxu0 0
    %1692 = vmatprep.subr.bf16.mxu0 0
    %1693 = vmatpush1.bf16.msra.mxu0 0
    %1694 = vmatprep.subr.bf16.mxu0 0
    %1695 = vmatpush1.bf16.msra.mxu0 0
    %1696 = vmatprep.subr.bf16.mxu0 0
    %1697 = vmatpush1.bf16.msra.mxu0 0
    %1698 = vmatprep.subr.bf16.mxu0 0
    %1699 = vmatpush1.bf16.msra.mxu0 0
    %1700 = vmatprep.subr.bf16.mxu0 0
    %1701 = vmatpush1.bf16.msra.mxu0 0
    %1702 = vmatprep.subr.bf16.mxu0 0
    %1703 = vmatpush1.bf16.msra.mxu0 0
    %1704 = vmatprep.mubr.bf16.mxu0 0
    %1705 = vmatmul.mubr.bf16.gmra.mrb[0].mxu0 %v1628
    %v1706 = vpop.f32.mrb[0].mxu0
    %v1707 = vadd.f32 0.0, %v1706
    %v1708 = vpop.f32.mrb[0].mxu0
    %v1709 = vadd.f32 0.0, %v1708
    %v1710 = vpop.f32.mrb[0].mxu0
    %v1711 = vadd.f32 0.0, %v1710
    %v1712 = vpop.f32.mrb[0].mxu0
    %v1713 = vadd.f32 0.0, %v1712
    %1714 = vdwg.mxu0
    %v1715 = vadd.f32 %v1618, %v1664
    %v1716 = vadd.f32 %v1619, %v1666
    %v1717 = vadd.f32 %v1620, %v1707
    %v1718 = vadd.f32 %v1621, %v1709
    %v1719 = vadd.f32 %v1622, %v1668
    %v1720 = vadd.f32 %v1623, %v1670
    %v1721 = vadd.f32 %v1624, %v1711
    %v1722 = vadd.f32 %v1625, %v1713
    %v1723 = vmul.f32 %v1715, 0.5
    %v1724 = vmul.f32 %v1719, 0.5
    %v1725 = vtanh.pop %v1723
    %v1726 = vtanh.pop %v1724
    %v1727 = vmul.f32 %v1725, 0.5
    %v1728 = vmul.f32 %v1726, 0.5
    %v1729 = vadd.f32 %v1727, 0.5
    %v1730 = vadd.f32 %v1728, 0.5
    %v1731 = vmul.f32 %v1716, 0.5
    %v1732 = vmul.f32 %v1720, 0.5
    %v1733 = vtanh.pop %v1731
    %v1734 = vtanh.pop %v1732
    %v1735 = vmul.f32 %v1733, 0.5
    %v1736 = vmul.f32 %v1734, 0.5
    %v1737 = vadd.f32 %v1735, 0.5
    %v1738 = vadd.f32 %v1736, 0.5
    %v1739 = vtanh.pop %v1717
    %v1740 = vtanh.pop %v1721
    %v1741 = vmul.f32 %v1718, 0.5
    %v1742 = vmul.f32 %v1722, 0.5
    %v1743 = vtanh.pop %v1741
    %v1744 = vtanh.pop %v1742
    %v1745 = vmul.f32 %v1743, 0.5
    %v1746 = vmul.f32 %v1744, 0.5
    %v1747 = vadd.f32 %v1745, 0.5
    %v1748 = vadd.f32 %v1746, 0.5
    %v1749 = vld [vmem:[#allocation4] sm:$0xff]
    %v1750 = vld [vmem:[#allocation4 + $0x8] sm:$0xff]
    %v1751 = vmul.f32 %v1737, %v1749
    %v1752 = vmul.f32 %v1738, %v1750
    %v1753 = vmul.f32 %v1729, %v1739
    %v1754 = vmul.f32 %v1730, %v1740
    %v1755 = vadd.f32 %v1751, %v1753
    %v1756 = vadd.f32 %v1752, %v1754
    %v1757 = vtanh.pop %v1755
    %v1758 = vtanh.pop %v1756
    %v1759 = vmul.f32 %v1747, %v1757
    %v1760 = vmul.f32 %v1748, %v1758
    %1761 = vst [vmem:[#allocation4] sm:$0xff] %v1755
    %1762 = vst [vmem:[#allocation4 + $0x8] sm:$0xff] %v1756
    %1763 = vst [vmem:[#allocation3] sm:$0xff] %v1759
    %1764 = vst [vmem:[#allocation3 + $0x8] sm:$0xff] %v1760
    %v1765 = vpack.c.bf16 %v1760, %v1759
    %v1767 = vunpack.c.l.b16 %v1765
    %v1768 = vunpack.c.h.b16 %v1765
    %v1769 = vpack.c.b16 %v1767, %v1767
    %v1770 = vpack.c.b16 %v1768, %v1768
    %s1773 = scalar_lea.vmem [#allocation8], 48
    %1774 = vst [vmem:[%s1773] sm:$0xf] %v1769
    %1775 = vst [vmem:[%s1773 + $0x4] sm:$0xf] %v1770
    %s1776 = smul.u32 14, 4
    %s1777 = smul.addr %s1776, 8
    %s1778 = scalar_lea.vmem [#allocation2], %s1777
    %v1779 = vld [vmem:[%s1778] sm:$0xff]
    %v1780 = vld [vmem:[%s1778 + $0x8] sm:$0xff]
    %v1781 = vld [vmem:[%s1778 + $0x10] sm:$0xff]
    %v1782 = vld [vmem:[%s1778 + $0x18] sm:$0xff]
    %v1783 = vld [vmem:[%s1778 + $0x20] sm:$0xff]
    %v1784 = vld [vmem:[%s1778 + $0x28] sm:$0xff]
    %v1785 = vld [vmem:[%s1778 + $0x30] sm:$0xff]
    %v1786 = vld [vmem:[%s1778 + $0x38] sm:$0xff]
    %v1787 = vld [vmem:[#allocation3] sm:$0xff]
    %v1788 = vld [vmem:[#allocation3 + $0x8] sm:$0xff]
    %v1789 = vpack.c.bf16 %v1788, %v1787
    %1790 = vmatprep.subr.bf16.mxu0 %v601
    %1791 = vmatpush1.bf16.msra.mxu0 %v600
    %1792 = vmatprep.subr.bf16.mxu0 %v605
    %1793 = vmatpush1.bf16.msra.mxu0 %v604
    %1794 = vmatprep.subr.bf16.mxu0 %v609
    %1795 = vmatpush1.bf16.msra.mxu0 %v608
    %1796 = vmatprep.subr.bf16.mxu0 %v613
    %1797 = vmatpush1.bf16.msra.mxu0 %v612
    %1798 = vmatprep.subr.bf16.mxu0 %v617
    %1799 = vmatpush1.bf16.msra.mxu0 %v616
    %1800 = vmatprep.subr.bf16.mxu0 %v621
    %1801 = vmatpush1.bf16.msra.mxu0 %v620
    %1802 = vmatprep.subr.bf16.mxu0 %v625
    %1803 = vmatpush1.bf16.msra.mxu0 %v624
    %1804 = vmatprep.subr.bf16.mxu0 %v629
    %1805 = vmatpush1.bf16.msra.mxu0 %v628
    %1806 = vmatprep.subr.bf16.mxu0 0
    %1807 = vmatpush1.bf16.msra.mxu0 0
    %1808 = vmatprep.subr.bf16.mxu0 0
    %1809 = vmatpush1.bf16.msra.mxu0 0
    %1810 = vmatprep.subr.bf16.mxu0 0
    %1811 = vmatpush1.bf16.msra.mxu0 0
    %1812 = vmatprep.subr.bf16.mxu0 0
    %1813 = vmatpush1.bf16.msra.mxu0 0
    %1814 = vmatprep.subr.bf16.mxu0 0
    %1815 = vmatpush1.bf16.msra.mxu0 0
    %1816 = vmatprep.subr.bf16.mxu0 0
    %1817 = vmatpush1.bf16.msra.mxu0 0
    %1818 = vmatprep.subr.bf16.mxu0 0
    %1819 = vmatpush1.bf16.msra.mxu0 0
    %1820 = vmatprep.subr.bf16.mxu0 0
    %1821 = vmatpush1.bf16.msra.mxu0 0
    %1822 = vmatprep.mubr.bf16.mxu0 0
    %1823 = vmatmul.mubr.bf16.gmra.mrb[0].mxu0 %v1789
    %v1824 = vpop.f32.mrb[0].mxu0
    %v1825 = vadd.f32 0.0, %v1824
    %v1826 = vpop.f32.mrb[0].mxu0
    %v1827 = vadd.f32 0.0, %v1826
    %v1828 = vpop.f32.mrb[0].mxu0
    %v1829 = vadd.f32 0.0, %v1828
    %v1830 = vpop.f32.mrb[0].mxu0
    %v1831 = vadd.f32 0.0, %v1830
    %1832 = vdwg.mxu0
    %1833 = vmatprep.subr.bf16.mxu0 %v603
    %1834 = vmatpush1.bf16.msra.mxu0 %v602
    %1835 = vmatprep.subr.bf16.mxu0 %v607
    %1836 = vmatpush1.bf16.msra.mxu0 %v606
    %1837 = vmatprep.subr.bf16.mxu0 %v611
    %1838 = vmatpush1.bf16.msra.mxu0 %v610
    %1839 = vmatprep.subr.bf16.mxu0 %v615
    %1840 = vmatpush1.bf16.msra.mxu0 %v614
    %1841 = vmatprep.subr.bf16.mxu0 %v619
    %1842 = vmatpush1.bf16.msra.mxu0 %v618
    %1843 = vmatprep.subr.bf16.mxu0 %v623
    %1844 = vmatpush1.bf16.msra.mxu0 %v622
    %1845 = vmatprep.subr.bf16.mxu0 %v627
    %1846 = vmatpush1.bf16.msra.mxu0 %v626
    %1847 = vmatprep.subr.bf16.mxu0 %v631
    %1848 = vmatpush1.bf16.msra.mxu0 %v630
    %1849 = vmatprep.subr.bf16.mxu0 0
    %1850 = vmatpush1.bf16.msra.mxu0 0
    %1851 = vmatprep.subr.bf16.mxu0 0
    %1852 = vmatpush1.bf16.msra.mxu0 0
    %1853 = vmatprep.subr.bf16.mxu0 0
    %1854 = vmatpush1.bf16.msra.mxu0 0
    %1855 = vmatprep.subr.bf16.mxu0 0
    %1856 = vmatpush1.bf16.msra.mxu0 0
    %1857 = vmatprep.subr.bf16.mxu0 0
    %1858 = vmatpush1.bf16.msra.mxu0 0
    %1859 = vmatprep.subr.bf16.mxu0 0
    %1860 = vmatpush1.bf16.msra.mxu0 0
    %1861 = vmatprep.subr.bf16.mxu0 0
    %1862 = vmatpush1.bf16.msra.mxu0 0
    %1863 = vmatprep.subr.bf16.mxu0 0
    %1864 = vmatpush1.bf16.msra.mxu0 0
    %1865 = vmatprep.mubr.bf16.mxu0 0
    %1866 = vmatmul.mubr.bf16.gmra.mrb[0].mxu0 %v1789
    %v1867 = vpop.f32.mrb[0].mxu0
    %v1868 = vadd.f32 0.0, %v1867
    %v1869 = vpop.f32.mrb[0].mxu0
    %v1870 = vadd.f32 0.0, %v1869
    %v1871 = vpop.f32.mrb[0].mxu0
    %v1872 = vadd.f32 0.0, %v1871
    %v1873 = vpop.f32.mrb[0].mxu0
    %v1874 = vadd.f32 0.0, %v1873
    %1875 = vdwg.mxu0
    %v1876 = vadd.f32 %v1779, %v1825
    %v1877 = vadd.f32 %v1780, %v1827
    %v1878 = vadd.f32 %v1781, %v1868
    %v1879 = vadd.f32 %v1782, %v1870
    %v1880 = vadd.f32 %v1783, %v1829
    %v1881 = vadd.f32 %v1784, %v1831
    %v1882 = vadd.f32 %v1785, %v1872
    %v1883 = vadd.f32 %v1786, %v1874
    %v1884 = vmul.f32 %v1876, 0.5
    %v1885 = vmul.f32 %v1880, 0.5
    %v1886 = vtanh.pop %v1884
    %v1887 = vtanh.pop %v1885
    %v1888 = vmul.f32 %v1886, 0.5
    %v1889 = vmul.f32 %v1887, 0.5
    %v1890 = vadd.f32 %v1888, 0.5
    %v1891 = vadd.f32 %v1889, 0.5
    %v1892 = vmul.f32 %v1877, 0.5
    %v1893 = vmul.f32 %v1881, 0.5
    %v1894 = vtanh.pop %v1892
    %v1895 = vtanh.pop %v1893
    %v1896 = vmul.f32 %v1894, 0.5
    %v1897 = vmul.f32 %v1895, 0.5
    %v1898 = vadd.f32 %v1896, 0.5
    %v1899 = vadd.f32 %v1897, 0.5
    %v1900 = vtanh.pop %v1878
    %v1901 = vtanh.pop %v1882
    %v1902 = vmul.f32 %v1879, 0.5
    %v1903 = vmul.f32 %v1883, 0.5
    %v1904 = vtanh.pop %v1902
    %v1905 = vtanh.pop %v1903
    %v1906 = vmul.f32 %v1904, 0.5
    %v1907 = vmul.f32 %v1905, 0.5
    %v1908 = vadd.f32 %v1906, 0.5
    %v1909 = vadd.f32 %v1907, 0.5
    %v1910 = vld [vmem:[#allocation4] sm:$0xff]
    %v1911 = vld [vmem:[#allocation4 + $0x8] sm:$0xff]
    %v1912 = vmul.f32 %v1898, %v1910
    %v1913 = vmul.f32 %v1899, %v1911
    %v1914 = vmul.f32 %v1890, %v1900
    %v1915 = vmul.f32 %v1891, %v1901
    %v1916 = vadd.f32 %v1912, %v1914
    %v1917 = vadd.f32 %v1913, %v1915
    %v1918 = vtanh.pop %v1916
    %v1919 = vtanh.pop %v1917
    %v1920 = vmul.f32 %v1908, %v1918
    %v1921 = vmul.f32 %v1909, %v1919
    %1922 = vst [vmem:[#allocation4] sm:$0xff] %v1916
    %1923 = vst [vmem:[#allocation4 + $0x8] sm:$0xff] %v1917
    %1924 = vst [vmem:[#allocation3] sm:$0xff] %v1920
    %1925 = vst [vmem:[#allocation3 + $0x8] sm:$0xff] %v1921
    %v1926 = vpack.c.bf16 %v1921, %v1920
    %v1928 = vunpack.c.l.b16 %v1926
    %v1929 = vunpack.c.h.b16 %v1926
    %v1930 = vpack.c.b16 %v1928, %v1928
    %v1931 = vpack.c.b16 %v1929, %v1929
    %s1934 = scalar_lea.vmem [#allocation8], 56
    %1935 = vst [vmem:[%s1934] sm:$0xf] %v1930
    %1936 = vst [vmem:[%s1934 + $0x4] sm:$0xf] %v1931
    // Predicated region
    $region26: #{tpu_custom_call.1} parent=1 // pred_check
      _
    $region27: #{tpu_custom_call.1} parent=1 // pred_check_branch
      %1938 = sbr.rel (0) target = $region29
    $region28: #{tpu_custom_call.1} parent=1 // pred_region
      %s1940 = ssub.s32 1024, 1024
      %1941 = vsyncadd [#allocation7], %s1940
      %s1942 = sshll.u32 [#allocation8], 4
      %s1943 = int_to_ptr.vmem [resolvable:$true] %s1942
      %1948 = dma.vmem_to_hbm [thread:$0]  %s1943, 1024, %s4, [#allocation7], 64, 64, 4
    $region29: #{tpu_custom_call.1} parent=1 // pred_fallthru
      _
    // Predicated region
    $region30: #{tpu_custom_call.1} parent=1 // pred_check
      _
    $region31: #{tpu_custom_call.1} parent=1 // pred_check_branch
      %1950 = sbr.rel (0) target = $region33
    $region32: #{tpu_custom_call.1} parent=1 // pred_region
      %1951 = dma.done [#allocation7], 1024
    $region33: #{tpu_custom_call.1} parent=1 // pred_fallthru
      _
    %1952 = vsyncpa [#allocation6], 1
    %1953 = vsyncpa [#allocation7], 1

</llo_original>
